<compile_context>
chip_gen: v5e
topology: v5e:2x2
jax: 0.10.0
libtpu: 0.0.40
codegen_flags: <defaults>
</compile_context>

<pallas_src>
import functools
import math

import jax
import jax.numpy as jnp
from jax import lax
from jax.experimental import pallas as pl
from jax.experimental.pallas import tpu as pltpu


def _detect_vmem_limit():
    """Generation-aware scoped-VMEM limit (v7x has only 64 MiB physical)."""
    try:
        cap = getattr(pltpu.get_tpu_info(), "vmem_capacity_bytes", None)
    except Exception:
        cap = None
    if cap is None:
        return 32 * 1024 * 1024                      # conservative fallback
    if cap >= 100 * 1024 * 1024:                     # v5e / v6e: 128 MiB physical
        return 96 * 1024 * 1024
    return min(48 * 1024 * 1024, (cap * 3) // 4)     # v7x: 64 MiB physical


_VMEM_LIMIT = _detect_vmem_limit()


def _cparams(*dims):
    return pltpu.CompilerParams(dimension_semantics=tuple(dims),
                                vmem_limit_bytes=_VMEM_LIMIT)


def _pick_tile(dim, preferred, granule):
    """Largest multiple of `granule` <= preferred that divides dim, else full dim."""
    if dim <= preferred:
        return dim
    t = (preferred // granule) * granule
    while t >= granule:
        if dim % t == 0:
            return t
        t -= granule
    # TODO(synk): pad non-(8,128)-divisible dims instead of falling back to the
    # full extent (a full-extent block can exceed VMEM for very large dims).
    return dim


# ----------------------------------------------------------------------------
# Pallas kernels
# ----------------------------------------------------------------------------
def _make_linear_kernel(activation):
    """o = x @ w + b (bf16 MXU inputs, f32 accumulation, optional GELU), bf16 out."""

    def kernel(x_ref, w_ref, b_ref, o_ref):
        z = jnp.dot(x_ref[...], w_ref[...], preferred_element_type=jnp.float32)
        z = z + b_ref[...]
        if activation == "gelu":
            # NOTE: tanh-approx GELU (EUP tanh); PyTorch nn.GELU default is erf.
            z = 0.5 * z * (1.0 + jnp.tanh(0.7978845608028654 *
                                          (z + 0.044715 * z * z * z)))
        o_ref[...] = z.astype(o_ref.dtype)

    return kernel


def pallas_linear(x, w, b, activation="none", tile_m_pref=512, tile_n_pref=512):
    """x: (M, K) bf16, w: (K, N) bf16, b: (N,) f32  ->  (M, N) bf16."""
    M, K = x.shape
    N = w.shape[1]
    tile_m = _pick_tile(M, tile_m_pref, 8)
    tile_n = _pick_tile(N, tile_n_pref, 128)
    return pl.pallas_call(
        _make_linear_kernel(activation),
        out_shape=jax.ShapeDtypeStruct((M, N), jnp.bfloat16),
        grid=(M // tile_m, N // tile_n),
        in_specs=[
            pl.BlockSpec((tile_m, K), lambda i, j: (i, 0)),
            pl.BlockSpec((K, tile_n), lambda i, j: (0, j)),
            pl.BlockSpec((1, tile_n), lambda i, j: (0, j)),
        ],
        out_specs=pl.BlockSpec((tile_m, tile_n), lambda i, j: (i, j)),
        compiler_params=_cparams("parallel", "parallel"),
    )(x.astype(jnp.bfloat16), w, b.reshape(1, N).astype(jnp.float32))


def pallas_linear_add_layernorm(x, w, b, residual, gamma, beta,
                                eps=1e-12, tile_m_pref=512):
    """LayerNorm(x @ w + b + residual): matmul epilogue fusion (tile_n == full H).

    Removes the separate add+LN kernel and its (M, H) HBM round trip.
    x: (M, K) bf16, w: (K, H) bf16, residual: (M, H) bf16  ->  (M, H) bf16.
    """
    M, K = x.shape
    N = w.shape[1]
    tile_m = _pick_tile(M, tile_m_pref, 8)

    def kernel(x_ref, w_ref, b_ref, r_ref, g_ref, be_ref, o_ref):
        z = jnp.dot(x_ref[...], w_ref[...], preferred_element_type=jnp.float32)
        y = z + b_ref[...] + r_ref[...].astype(jnp.float32)
        mu = jnp.mean(y, axis=-1, keepdims=True)
        var = jnp.mean(jnp.square(y - mu), axis=-1, keepdims=True)
        yn = (y - mu) * lax.rsqrt(var + eps)
        o_ref[...] = (yn * g_ref[...] + be_ref[...]).astype(o_ref.dtype)

    return pl.pallas_call(
        kernel,
        out_shape=jax.ShapeDtypeStruct((M, N), jnp.bfloat16),
        grid=(M // tile_m,),
        in_specs=[
            pl.BlockSpec((tile_m, K), lambda i: (i, 0)),
            pl.BlockSpec((K, N), lambda i: (0, 0)),
            pl.BlockSpec((1, N), lambda i: (0, 0)),
            pl.BlockSpec((tile_m, N), lambda i: (i, 0)),
            pl.BlockSpec((1, N), lambda i: (0, 0)),
            pl.BlockSpec((1, N), lambda i: (0, 0)),
        ],
        out_specs=pl.BlockSpec((tile_m, N), lambda i: (i, 0)),
        compiler_params=_cparams("parallel"),
    )(x.astype(jnp.bfloat16), w, b.reshape(1, N).astype(jnp.float32),
      residual, gamma.reshape(1, N), beta.reshape(1, N))


def pallas_attention_block(qkv, residual, wo, bo, gamma, beta, n_heads,
                           eps=1e-12):
    """Fused attention block: LN1(residual + bo + MHA(qkv) @ wo).

    qkv:      (B, S, 3H) bf16  (fused Q|K|V projection output)
    residual: (B, S, H)  bf16  (the encoder-layer input x)
    wo:       (H, H)     bf16  (attention output projection, resident in VMEM)
    Output:   (B, S, H)  bf16
    One grid step per batch element.  Heads are processed by lane-slicing the
    3H dim; each head's context is immediately multiplied by its wo row-slice
    and accumulated, so no per-head concat and no extra HBM round trip.
    """
    B, S, H3 = qkv.shape
    H = H3 // 3
    Dh = H // n_heads
    scale = 1.0 / math.sqrt(Dh)

    def kernel(qkv_ref, res_ref, wo_ref, bo_ref, g_ref, be_ref, o_ref):
        xb = qkv_ref[...]                                  # (S, 3H) bf16
        wo_w = wo_ref[...]                                 # (H, H)  bf16
        acc = jnp.zeros((S, H), jnp.float32)
        # TODO(synk): add flash-style KV tiling (online softmax) for long S so
        # the full (S, S) score never materializes (needed on v7x 64 MiB VMEM).
        for h in range(n_heads):                           # static unroll;
            q = xb[:, h * Dh:(h + 1) * Dh] * scale         # scale folded into q
            k = xb[:, H + h * Dh:H + (h + 1) * Dh]
            v = xb[:, 2 * H + h * Dh:2 * H + (h + 1) * Dh]
            s = lax.dot_general(q, k, (((1,), (1,)), ((), ())),
                                preferred_element_type=jnp.float32)   # (S, S)
            m = jnp.max(s, axis=-1, keepdims=True)
            p = jnp.exp(s - m)
            p = p * pl.reciprocal(jnp.sum(p, axis=-1, keepdims=True), approx=True)
            ctx = jnp.dot(p.astype(jnp.bfloat16), v,
                          preferred_element_type=jnp.float32)         # (S, Dh)
            acc = acc + jnp.dot(ctx.astype(jnp.bfloat16),
                                wo_w[h * Dh:(h + 1) * Dh, :],
                                preferred_element_type=jnp.float32)   # (S, H)
        y = acc + bo_ref[...] + res_ref[...].astype(jnp.float32)
        mu = jnp.mean(y, axis=-1, keepdims=True)
        var = jnp.mean(jnp.square(y - mu), axis=-1, keepdims=True)
        yn = (y - mu) * lax.rsqrt(var + eps)
        o_ref[...] = (yn * g_ref[...] + be_ref[...]).astype(o_ref.dtype)

    return pl.pallas_call(
        kernel,
        out_shape=jax.ShapeDtypeStruct((B, S, H), jnp.bfloat16),
        grid=(B,),
        in_specs=[
            pl.BlockSpec((pl.Squeezed(), S, 3 * H), lambda b: (b, 0, 0)),
            pl.BlockSpec((pl.Squeezed(), S, H), lambda b: (b, 0, 0)),
            pl.BlockSpec((H, H), lambda b: (0, 0)),
            pl.BlockSpec((1, H), lambda b: (0, 0)),
            pl.BlockSpec((1, H), lambda b: (0, 0)),
            pl.BlockSpec((1, H), lambda b: (0, 0)),
        ],
        out_specs=pl.BlockSpec((pl.Squeezed(), S, H), lambda b: (b, 0, 0)),
        compiler_params=_cparams("parallel"),
    )(qkv, residual, wo, bo.reshape(1, H).astype(jnp.float32),
      gamma.reshape(1, H), beta.reshape(1, H))


def pallas_layernorm(x, gamma, beta, eps=1e-12, tile_m_pref=512):
    """Embedding LayerNorm: (M, H) f32 in, bf16 out (f32 math inside)."""
    M, H = x.shape
    tile_m = _pick_tile(M, tile_m_pref, 8)

    def kernel(x_ref, g_ref, b_ref, o_ref):
        xf = x_ref[...].astype(jnp.float32)
        mu = jnp.mean(xf, axis=-1, keepdims=True)
        var = jnp.mean(jnp.square(xf - mu), axis=-1, keepdims=True)
        y = (xf - mu) * lax.rsqrt(var + eps)
        o_ref[...] = (y * g_ref[...] + b_ref[...]).astype(o_ref.dtype)

    return pl.pallas_call(
        kernel,
        out_shape=jax.ShapeDtypeStruct((M, H), jnp.bfloat16),
        grid=(M // tile_m,),
        in_specs=[pl.BlockSpec((tile_m, H), lambda i: (i, 0)),
                  pl.BlockSpec((1, H), lambda i: (0, 0)),
                  pl.BlockSpec((1, H), lambda i: (0, 0))],
        out_specs=pl.BlockSpec((tile_m, H), lambda i: (i, 0)),
        compiler_params=_cparams("parallel"),
    )(x, gamma.reshape(1, H), beta.reshape(1, H))


def pallas_linear_logsoftmax(x, w, b, tile_m_pref=1024, tile_n_pref=512):
    """log_softmax(x @ w + b, axis=-1) with the N (vocab) axis tiled.

    Grid = (M tiles, phase, N tiles).  Phase 0 streams the weight N-tiles and
    accumulates a running (row-max, sum-exp) in VMEM scratch; phase 1
    recomputes each logits tile and writes `logits - logsumexp`.  VMEM stays
    bounded for large vocabularies (no resident (K, V) weight) at the cost of
    a second matmul pass.  tile_m=1024 keeps the weight streaming <= 2 passes
    per 1024 rows, flipping the kernel from weight-DMA-bound to MXU-bound.
    """
    M, K = x.shape
    V = w.shape[1]
    # Pad the vocab axis to a multiple of the lane tile so stores stay
    # lane-dense (padded columns get bias=-1e30 -> exp()=0, logsumexp intact).
    # TODO(synk): for real checkpoints pad the weight once at load time instead
    # of per-call.
    if V > tile_n_pref and V % tile_n_pref != 0:
        Vp = ((V + tile_n_pref - 1) // tile_n_pref) * tile_n_pref
        w = jnp.concatenate([w, jnp.zeros((K, Vp - V), w.dtype)], axis=1)
        b = jnp.concatenate([b, jnp.full((Vp - V,), -1e30, b.dtype)], axis=0)
    else:
        Vp = V
    tile_m = _pick_tile(M, tile_m_pref, 8)
    tile_n = _pick_tile(Vp, tile_n_pref, 128)

    def kernel(x_ref, w_ref, b_ref, o_ref, m_ref, l_ref):
        phase = pl.program_id(1)
        j = pl.program_id(2)
        z = jnp.dot(x_ref[...], w_ref[...], preferred_element_type=jnp.float32)
        z = z + b_ref[...]

        @pl.when(jnp.logical_and(phase == 0, j == 0))
        def _():
            m_ref[...] = jnp.full(m_ref.shape, -jnp.inf, dtype=m_ref.dtype)
            l_ref[...] = jnp.zeros(l_ref.shape, dtype=l_ref.dtype)

        @pl.when(phase == 0)
        def _():
            m_prev = m_ref[...]
            m_new = jnp.maximum(m_prev, jnp.max(z, axis=-1, keepdims=True))
            l_ref[...] = (l_ref[...] * jnp.exp(m_prev - m_new)
                          + jnp.sum(jnp.exp(z - m_new), axis=-1, keepdims=True))
            m_ref[...] = m_new

        @pl.when(phase == 1)
        def _():
            lse = m_ref[...] + jnp.log(l_ref[...])
            o_ref[...] = (z - lse).astype(o_ref.dtype)

    out = pl.pallas_call(
        kernel,
        out_shape=jax.ShapeDtypeStruct((M, Vp), jnp.float32),
        grid=(M // tile_m, 2, Vp // tile_n),
        in_specs=[
            pl.BlockSpec((tile_m, K), lambda i, p, j: (i, 0)),
            pl.BlockSpec((K, tile_n), lambda i, p, j: (0, j)),
            pl.BlockSpec((1, tile_n), lambda i, p, j: (0, j)),
        ],
        # During phase 0 every j aliases output block (i, 0); phase 1 rewrites
        # it (and all other (i, j) blocks) before they are flushed to HBM.
        out_specs=pl.BlockSpec((tile_m, tile_n), lambda i, p, j: (i, j * p)),
        scratch_shapes=[pltpu.VMEM((tile_m, 1), jnp.float32),
                        pltpu.VMEM((tile_m, 1), jnp.float32)],
        compiler_params=_cparams("parallel", "arbitrary", "arbitrary"),
    )(x.astype(jnp.bfloat16), w, b.reshape(1, Vp).astype(jnp.float32))
    return out[:, :V] if Vp != V else out


# ----------------------------------------------------------------------------
# Model: small BERT encoder + BERTLM heads
# ----------------------------------------------------------------------------
def _encoder_layer(p, x2, B, S, H, n_heads):
    M = B * S
    qkv = pallas_linear(x2, p["w_qkv"], p["b_qkv"])                  # (M,3H) bf16
    # Fused: per-head attention + output projection + bias + residual + LN1.
    x2 = pallas_attention_block(
        qkv.reshape(B, S, 3 * H), x2.reshape(B, S, H),
        p["wo"], p["bo"], p["ln1_g"], p["ln1_b"], n_heads).reshape(M, H)
    ff = pallas_linear(x2, p["w1"], p["b1"], activation="gelu")      # (M,FFN) bf16
    # Fused: second FFN matmul + bias + residual + LN2.
    x2 = pallas_linear_add_layernorm(ff, p["w2"], p["b2"], x2,
                                     p["ln2_g"], p["ln2_b"])
    return x2


def bert_forward(params, sequence, segment, n_heads):
    """Returns the encoder output, shape (B, S, H), bf16."""
    B, S = sequence.shape
    H = params["tok_emb"].shape[1]

    # Embedding gathers stay in JAX glue (no clean Pallas gather equivalent).
    x = (params["tok_emb"][sequence]
         + params["seg_emb"][segment]
         + params["pos_emb"][jnp.arange(S)][None, :, :])
    x2 = pallas_layernorm(x.reshape(B * S, H),
                          params["emb_ln_g"], params["emb_ln_b"])

    for layer_p in params["layers"]:
        x2 = _encoder_layer(layer_p, x2, B, S, H, n_heads)

    return x2.reshape(B, S, H)


@functools.partial(jax.jit, static_argnames=("n_heads",))
def bertlm_forward(params, sequence, segment, *, n_heads):
    """BERTLM.forward: (token_pred_logprobs, classifier_logprobs)."""
    bert_out = bert_forward(params["bert"], sequence, segment, n_heads)  # (B,S,H)
    B, S, H = bert_out.shape
    V = params["tok_pred_w"].shape[1]

    # Masked-LM head: N-tiled linear + online log_softmax fused in one kernel.
    token_pred = pallas_linear_logsoftmax(
        bert_out.reshape(B * S, H), params["tok_pred_w"], params["tok_pred_b"]
    ).reshape(B, S, V)

    # NSP head on the [CLS] position: (B, H) @ (H, 2) is nanoseconds of MXU
    # work, so plain JAX (no padded Pallas kernel, no extra launch).
    cls_in = bert_out[:, 0].astype(jnp.float32)                          # (B, H)
    logits = cls_in @ params["cls_w"].astype(jnp.float32) + params["cls_b"]
    classifier = jax.nn.log_softmax(logits, axis=-1)

    return token_pred, classifier


# ----------------------------------------------------------------------------
# Deterministic parameter init
# ----------------------------------------------------------------------------
def init_params(key, *, vocab_size, hidden, seq_len, n_layers, n_heads, ffn):
    del n_heads  # kept static, passed to the forward separately
    keys = iter(jax.random.split(key, 64))

    def dense(k, shape, scale=0.02):
        # Matmul weights live in bf16: bf16 MXU inputs + half the weight DMA.
        # TODO(synk): on v7x the (H, V) MLM weight could be stored fp8.
        return (scale * jax.random.normal(k, shape)).astype(jnp.bfloat16)

    def emb(k, shape, scale=0.02):
        return (scale * jax.random.normal(k, shape)).astype(jnp.float32)

    def layer_params():
        return {
            "w_qkv": dense(next(keys), (hidden, 3 * hidden)),   # fused Q|K|V
            "b_qkv": jnp.zeros((3 * hidden,), jnp.float32),
            "wo": dense(next(keys), (hidden, hidden)),
            "bo": jnp.zeros((hidden,), jnp.float32),
            "ln1_g": jnp.ones((hidden,), jnp.float32),
            "ln1_b": jnp.zeros((hidden,), jnp.float32),
            "w1": dense(next(keys), (hidden, ffn)),
            "b1": jnp.zeros((ffn,), jnp.float32),
            "w2": dense(next(keys), (ffn, hidden)),
            "b2": jnp.zeros((hidden,), jnp.float32),
            "ln2_g": jnp.ones((hidden,), jnp.float32),
            "ln2_b": jnp.zeros((hidden,), jnp.float32),
        }

    bert = {
        "tok_emb": emb(next(keys), (vocab_size, hidden)),
        "seg_emb": emb(next(keys), (2, hidden)),
        "pos_emb": emb(next(keys), (seq_len, hidden)),
        "emb_ln_g": jnp.ones((hidden,), jnp.float32),
        "emb_ln_b": jnp.zeros((hidden,), jnp.float32),
        "layers": [layer_params() for _ in range(n_layers)],
    }
    return {
        "bert": bert,
        "tok_pred_w": dense(next(keys), (hidden, vocab_size)),
        "tok_pred_b": jnp.zeros((vocab_size,), jnp.float32),
        "cls_w": dense(next(keys), (hidden, 2)),
        "cls_b": jnp.zeros((2,), jnp.float32),
    }


# ----------------------------------------------------------------------------
# Main
# ----------------------------------------------------------------------------
if __name__ == "__main__":
    B, S, H, V = 2, 8, 32, 64
    N_LAYERS, N_HEADS, FFN = 2, 2, 64

    key = jax.random.PRNGKey(0)
    k_param, k_seq, k_seg = jax.random.split(key, 3)

    params = init_params(k_param, vocab_size=V, hidden=H, seq_len=S,
                         n_layers=N_LAYERS, n_heads=N_HEADS, ffn=FFN)

    sequence = jax.random.randint(k_seq, (B, S), 0, V, dtype=jnp.int32)
    segment = jax.random.randint(k_seg, (B, S), 0, 2, dtype=jnp.int32)

    token_pred, classifier = bertlm_forward(params, sequence, segment,
                                            n_heads=N_HEADS)
    jax.block_until_ready((token_pred, classifier))

    assert token_pred.shape == (B, S, V)
    assert classifier.shape == (B, 2)
    assert bool(jnp.all(jnp.isfinite(token_pred)))
    assert bool(jnp.all(jnp.isfinite(classifier)))

    print("KERNEL_OK")
</pallas_src>

<mosaic_0001>
module attributes {stable_mosaic.version = 11 : i64} {
  func.func @kernel(%arg0: i32, %arg1: i32, %arg2: memref<16x32xbf16, #tpu.memory_space<vmem>>, %arg3: memref<32x96xbf16, #tpu.memory_space<vmem>>, %arg4: memref<1x96xf32, #tpu.memory_space<vmem>>, %arg5: memref<16x96xbf16, #tpu.memory_space<vmem>>) attributes {dimension_semantics = [#tpu.dimension_semantics<parallel>, #tpu.dimension_semantics<parallel>], iteration_bounds = array<i64: 1, 1>, scalar_prefetch = 0 : i64, scratch_operands = 0 : i64, tpu.core_type = #tpu.core_type<tc>, window_params = [{transform_indices = @transform_0, window_bounds = array<i64: 16, 32>}, {transform_indices = @transform_1, window_bounds = array<i64: 32, 96>}, {transform_indices = @transform_2, window_bounds = array<i64: 1, 96>}, {transform_indices = @transform_3, window_bounds = array<i64: 16, 96>}]} {
    %c0 = arith.constant 0 : index
    %c0_0 = arith.constant 0 : index
    %0 = vector.load %arg2[%c0, %c0_0] : memref<16x32xbf16, #tpu.memory_space<vmem>>, vector<16x32xbf16>
    %c0_1 = arith.constant 0 : index
    %c0_2 = arith.constant 0 : index
    %1 = vector.load %arg3[%c0_1, %c0_2] : memref<32x96xbf16, #tpu.memory_space<vmem>>, vector<32x96xbf16>
    %cst = arith.constant dense<0.000000e+00> : vector<16x96xf32>
    %2 = tpu.matmul %0, %1, %cst {dimension_numbers = #tpu.dot_dimension_numbers<[1], [0], [0], [1], [0, 0, 1, 1], [], []>} : vector<16x32xbf16>, vector<32x96xbf16>, vector<16x96xf32> -> vector<16x96xf32>
    %c0_3 = arith.constant 0 : index
    %c0_4 = arith.constant 0 : index
    %3 = vector.load %arg4[%c0_3, %c0_4] : memref<1x96xf32, #tpu.memory_space<vmem>>, vector<1x96xf32>
    %4 = vector.broadcast %3 : vector<1x96xf32> to vector<16x96xf32>
    %5 = arith.addf %2, %4 : vector<16x96xf32>
    %6 = arith.truncf %5 : vector<16x96xf32> to vector<16x96xbf16>
    %c0_5 = arith.constant 0 : index
    %c0_6 = arith.constant 0 : index
    %7 = vector.load %arg5[%c0_5, %c0_6] : memref<16x96xbf16, #tpu.memory_space<vmem>>, vector<16x96xbf16>
    tpu.vector_store %arg5[%c0_5, %c0_6], %6 {strides = array<i32>} : memref<16x96xbf16, #tpu.memory_space<vmem>>, vector<16x96xbf16>,
    return
  }
  func.func @transform_0(%arg0: i32, %arg1: i32) -> (i32, i32) {
    %c0_i32 = arith.constant 0 : i32
    %c0_i32_0 = arith.constant 0 : i32
    return %arg0, %c0_i32 : i32, i32
  }
  func.func @transform_1(%arg0: i32, %arg1: i32) -> (i32, i32) {
    %c0_i32 = arith.constant 0 : i32
    %c0_i32_0 = arith.constant 0 : i32
    return %c0_i32, %arg1 : i32, i32
  }
  func.func @transform_2(%arg0: i32, %arg1: i32) -> (i32, i32) {
    %c0_i32 = arith.constant 0 : i32
    %c0_i32_0 = arith.constant 0 : i32
    return %c0_i32, %arg1 : i32, i32
  }
  func.func @transform_3(%arg0: i32, %arg1: i32) -> (i32, i32) {
    %c0_i32 = arith.constant 0 : i32
    return %arg0, %arg1 : i32, i32
  }
}

module attributes {stable_mosaic.version = 11 : i64} {
  func.func @kernel(%arg0: i32, %arg1: memref<16x32xf32, #tpu.memory_space<vmem>>, %arg2: memref<1x32xf32, #tpu.memory_space<vmem>>, %arg3: memref<1x32xf32, #tpu.memory_space<vmem>>, %arg4: memref<16x32xbf16, #tpu.memory_space<vmem>>) attributes {dimension_semantics = [#tpu.dimension_semantics<parallel>], iteration_bounds = array<i64: 1>, scalar_prefetch = 0 : i64, scratch_operands = 0 : i64, tpu.core_type = #tpu.core_type<tc>, window_params = [{transform_indices = @transform_0, window_bounds = array<i64: 16, 32>}, {pipeline_mode = #tpu.pipeline_mode<synchronous>, transform_indices = @transform_1, window_bounds = array<i64: 1, 32>}, {pipeline_mode = #tpu.pipeline_mode<synchronous>, transform_indices = @transform_2, window_bounds = array<i64: 1, 32>}, {transform_indices = @transform_3, window_bounds = array<i64: 16, 32>}]} {
    %c0 = arith.constant 0 : index
    %c0_0 = arith.constant 0 : index
    %0 = vector.load %arg1[%c0, %c0_0] : memref<16x32xf32, #tpu.memory_space<vmem>>, vector<16x32xf32>
    %cst = arith.constant dense<0.000000e+00> : vector<16xf32>
    %1 = vector.multi_reduction <add>, %0, %cst [1] : vector<16x32xf32> to vector<16xf32>
    %2 = vector.shape_cast %1 : vector<16xf32> to vector<16x1xf32>
    %cst_1 = arith.constant 3.200000e+01 : f32
    %3 = vector.broadcast %cst_1 : f32 to vector<16x1xf32>
    %4 = arith.divf %2, %3 : vector<16x1xf32>
    %5 = vector.broadcast %4 : vector<16x1xf32> to vector<16x32xf32>
    %6 = arith.subf %0, %5 : vector<16x32xf32>
    %7 = arith.mulf %6, %6 : vector<16x32xf32>
    %cst_2 = arith.constant dense<0.000000e+00> : vector<16xf32>
    %8 = vector.multi_reduction <add>, %7, %cst_2 [1] : vector<16x32xf32> to vector<16xf32>
    %9 = vector.shape_cast %8 : vector<16xf32> to vector<16x1xf32>
    %cst_3 = arith.constant 3.200000e+01 : f32
    %10 = vector.broadcast %cst_3 : f32 to vector<16x1xf32>
    %11 = arith.divf %9, %10 : vector<16x1xf32>
    %12 = vector.broadcast %4 : vector<16x1xf32> to vector<16x32xf32>
    %13 = arith.subf %0, %12 : vector<16x32xf32>
    %cst_4 = arith.constant 9.99999996E-13 : f32
    %14 = vector.broadcast %cst_4 : f32 to vector<16x1xf32>
    %15 = arith.addf %11, %14 : vector<16x1xf32>
    %16 = math.rsqrt %15 : vector<16x1xf32>
    %17 = vector.broadcast %16 : vector<16x1xf32> to vector<16x32xf32>
    %18 = arith.mulf %13, %17 : vector<16x32xf32>
    %c0_5 = arith.constant 0 : index
    %c0_6 = arith.constant 0 : index
    %19 = vector.load %arg2[%c0_5, %c0_6] : memref<1x32xf32, #tpu.memory_space<vmem>>, vector<1x32xf32>
    %20 = vector.broadcast %19 : vector<1x32xf32> to vector<16x32xf32>
    %21 = arith.mulf %18, %20 : vector<16x32xf32>
    %c0_7 = arith.constant 0 : index
    %c0_8 = arith.constant 0 : index
    %22 = vector.load %arg3[%c0_7, %c0_8] : memref<1x32xf32, #tpu.memory_space<vmem>>, vector<1x32xf32>
    %23 = vector.broadcast %22 : vector<1x32xf32> to vector<16x32xf32>
    %24 = arith.addf %21, %23 : vector<16x32xf32>
    %25 = arith.truncf %24 : vector<16x32xf32> to vector<16x32xbf16>
    %c0_9 = arith.constant 0 : index
    %c0_10 = arith.constant 0 : index
    %26 = vector.load %arg4[%c0_9, %c0_10] : memref<16x32xbf16, #tpu.memory_space<vmem>>, vector<16x32xbf16>
    tpu.vector_store %arg4[%c0_9, %c0_10], %25 {strides = array<i32>} : memref<16x32xbf16, #tpu.memory_space<vmem>>, vector<16x32xbf16>,
    return
  }
  func.func @transform_0(%arg0: i32) -> (i32, i32) {
    %c0_i32 = arith.constant 0 : i32
    %c0_i32_0 = arith.constant 0 : i32
    return %arg0, %c0_i32 : i32, i32
  }
  func.func @transform_1(%arg0: i32) -> (i32, i32) {
    %c0_i32 = arith.constant 0 : i32
    %c0_i32_0 = arith.constant 0 : i32
    %c0_i32_1 = arith.constant 0 : i32
    return %c0_i32, %c0_i32_0 : i32, i32
  }
  func.func @transform_2(%arg0: i32) -> (i32, i32) {
    %c0_i32 = arith.constant 0 : i32
    %c0_i32_0 = arith.constant 0 : i32
    %c0_i32_1 = arith.constant 0 : i32
    return %c0_i32, %c0_i32_0 : i32, i32
  }
  func.func @transform_3(%arg0: i32) -> (i32, i32) {
    %c0_i32 = arith.constant 0 : i32
    %c0_i32_0 = arith.constant 0 : i32
    return %arg0, %c0_i32 : i32, i32
  }
}

module attributes {stable_mosaic.version = 11 : i64} {
  func.func @kernel(%arg0: i32, %arg1: i32, %arg2: memref<16x32xbf16, #tpu.memory_space<vmem>>, %arg3: memref<32x64xbf16, #tpu.memory_space<vmem>>, %arg4: memref<1x64xf32, #tpu.memory_space<vmem>>, %arg5: memref<16x64xbf16, #tpu.memory_space<vmem>>) attributes {dimension_semantics = [#tpu.dimension_semantics<parallel>, #tpu.dimension_semantics<parallel>], iteration_bounds = array<i64: 1, 1>, scalar_prefetch = 0 : i64, scratch_operands = 0 : i64, tpu.core_type = #tpu.core_type<tc>, window_params = [{transform_indices = @transform_0, window_bounds = array<i64: 16, 32>}, {transform_indices = @transform_1, window_bounds = array<i64: 32, 64>}, {transform_indices = @transform_2, window_bounds = array<i64: 1, 64>}, {transform_indices = @transform_3, window_bounds = array<i64: 16, 64>}]} {
    %c0 = arith.constant 0 : index
    %c0_0 = arith.constant 0 : index
    %0 = vector.load %arg2[%c0, %c0_0] : memref<16x32xbf16, #tpu.memory_space<vmem>>, vector<16x32xbf16>
    %c0_1 = arith.constant 0 : index
    %c0_2 = arith.constant 0 : index
    %1 = vector.load %arg3[%c0_1, %c0_2] : memref<32x64xbf16, #tpu.memory_space<vmem>>, vector<32x64xbf16>
    %cst = arith.constant dense<0.000000e+00> : vector<16x64xf32>
    %2 = tpu.matmul %0, %1, %cst {dimension_numbers = #tpu.dot_dimension_numbers<[1], [0], [0], [1], [0, 0, 1, 1], [], []>} : vector<16x32xbf16>, vector<32x64xbf16>, vector<16x64xf32> -> vector<16x64xf32>
    %c0_3 = arith.constant 0 : index
    %c0_4 = arith.constant 0 : index
    %3 = vector.load %arg4[%c0_3, %c0_4] : memref<1x64xf32, #tpu.memory_space<vmem>>, vector<1x64xf32>
    %4 = vector.broadcast %3 : vector<1x64xf32> to vector<16x64xf32>
    %5 = arith.addf %2, %4 : vector<16x64xf32>
    %cst_5 = arith.constant 5.000000e-01 : f32
    %6 = vector.broadcast %cst_5 : f32 to vector<16x64xf32>
    %7 = arith.mulf %6, %5 : vector<16x64xf32>
    %cst_6 = arith.constant 4.471500e-02 : f32
    %8 = vector.broadcast %cst_6 : f32 to vector<16x64xf32>
    %9 = arith.mulf %8, %5 : vector<16x64xf32>
    %10 = arith.mulf %9, %5 : vector<16x64xf32>
    %11 = arith.mulf %10, %5 : vector<16x64xf32>
    %12 = arith.addf %5, %11 : vector<16x64xf32>
    %cst_7 = arith.constant 0.797884583 : f32
    %13 = vector.broadcast %cst_7 : f32 to vector<16x64xf32>
    %14 = arith.mulf %13, %12 : vector<16x64xf32>
    %15 = math.tanh %14 : vector<16x64xf32>
    %cst_8 = arith.constant 1.000000e+00 : f32
    %16 = vector.broadcast %cst_8 : f32 to vector<16x64xf32>
    %17 = arith.addf %16, %15 : vector<16x64xf32>
    %18 = arith.mulf %7, %17 : vector<16x64xf32>
    %19 = arith.truncf %18 : vector<16x64xf32> to vector<16x64xbf16>
    %c0_9 = arith.constant 0 : index
    %c0_10 = arith.constant 0 : index
    %20 = vector.load %arg5[%c0_9, %c0_10] : memref<16x64xbf16, #tpu.memory_space<vmem>>, vector<16x64xbf16>
    tpu.vector_store %arg5[%c0_9, %c0_10], %19 {strides = array<i32>} : memref<16x64xbf16, #tpu.memory_space<vmem>>, vector<16x64xbf16>,
    return
  }
  func.func @transform_0(%arg0: i32, %arg1: i32) -> (i32, i32) {
    %c0_i32 = arith.constant 0 : i32
    %c0_i32_0 = arith.constant 0 : i32
    return %arg0, %c0_i32 : i32, i32
  }
  func.func @transform_1(%arg0: i32, %arg1: i32) -> (i32, i32) {
    %c0_i32 = arith.constant 0 : i32
    %c0_i32_0 = arith.constant 0 : i32
    return %c0_i32, %arg1 : i32, i32
  }
  func.func @transform_2(%arg0: i32, %arg1: i32) -> (i32, i32) {
    %c0_i32 = arith.constant 0 : i32
    %c0_i32_0 = arith.constant 0 : i32
    return %c0_i32, %arg1 : i32, i32
  }
  func.func @transform_3(%arg0: i32, %arg1: i32) -> (i32, i32) {
    %c0_i32 = arith.constant 0 : i32
    return %arg0, %arg1 : i32, i32
  }
}

module attributes {stable_mosaic.version = 11 : i64} {
  func.func @kernel(%arg0: i32, %arg1: memref<1x8x96xbf16, #tpu.memory_space<vmem>>, %arg2: memref<1x8x32xbf16, #tpu.memory_space<vmem>>, %arg3: memref<32x32xbf16, #tpu.memory_space<vmem>>, %arg4: memref<1x32xf32, #tpu.memory_space<vmem>>, %arg5: memref<1x32xf32, #tpu.memory_space<vmem>>, %arg6: memref<1x32xf32, #tpu.memory_space<vmem>>, %arg7: memref<1x8x32xbf16, #tpu.memory_space<vmem>>) attributes {dimension_semantics = [#tpu.dimension_semantics<parallel>], iteration_bounds = array<i64: 2>, scalar_prefetch = 0 : i64, scratch_operands = 0 : i64, tpu.core_type = #tpu.core_type<tc>, window_params = [{transform_indices = @transform_0, window_bounds = array<i64: 1, 8, 96>}, {transform_indices = @transform_1, window_bounds = array<i64: 1, 8, 32>}, {pipeline_mode = #tpu.pipeline_mode<synchronous>, transform_indices = @transform_2, window_bounds = array<i64: 32, 32>}, {pipeline_mode = #tpu.pipeline_mode<synchronous>, transform_indices = @transform_3, window_bounds = array<i64: 1, 32>}, {pipeline_mode = #tpu.pipeline_mode<synchronous>, transform_indices = @transform_4, window_bounds = array<i64: 1, 32>}, {pipeline_mode = #tpu.pipeline_mode<synchronous>, transform_indices = @transform_5, window_bounds = array<i64: 1, 32>}, {transform_indices = @transform_6, window_bounds = array<i64: 1, 8, 32>}]} {
    %c0 = arith.constant 0 : index
    %c0_0 = arith.constant 0 : index
    %c0_1 = arith.constant 0 : index
    %0 = vector.load %arg1[%c0, %c0_0, %c0_1] : memref<1x8x96xbf16, #tpu.memory_space<vmem>>, vector<1x8x96xbf16>
    %1 = vector.shape_cast %0 : vector<1x8x96xbf16> to vector<8x96xbf16>
    %c0_2 = arith.constant 0 : index
    %c0_3 = arith.constant 0 : index
    %2 = vector.load %arg3[%c0_2, %c0_3] : memref<32x32xbf16, #tpu.memory_space<vmem>>, vector<32x32xbf16>
    %cst = arith.constant 0.000000e+00 : f32
    %3 = vector.broadcast %cst : f32 to vector<8x32xf32>
    %4 = vector.extract_strided_slice %1 {offsets = [0, 0], sizes = [8, 16], strides = [1, 1]} : vector<8x96xbf16> to vector<8x16xbf16>
    %cst_4 = arith.constant 2.500000e-01 : bf16
    %5 = vector.broadcast %cst_4 : bf16 to vector<8x16xbf16>
    %6 = arith.mulf %4, %5 : vector<8x16xbf16>
    %7 = vector.extract_strided_slice %1 {offsets = [0, 32], sizes = [8, 16], strides = [1, 1]} : vector<8x96xbf16> to vector<8x16xbf16>
    %8 = vector.extract_strided_slice %1 {offsets = [0, 64], sizes = [8, 16], strides = [1, 1]} : vector<8x96xbf16> to vector<8x16xbf16>
    %cst_5 = arith.constant dense<0.000000e+00> : vector<8x8xf32>
    %9 = tpu.matmul %6, %7, %cst_5 {dimension_numbers = #tpu.dot_dimension_numbers<[1], [1], [0], [0], [0, 0, 1, 0], [], []>} : vector<8x16xbf16>, vector<8x16xbf16>, vector<8x8xf32> -> vector<8x8xf32>
    %cst_6 = arith.constant dense<0xFF800000> : vector<8xf32>
    %10 = vector.multi_reduction <maximumf>, %9, %cst_6 [1] : vector<8x8xf32> to vector<8xf32>
    %11 = vector.shape_cast %10 : vector<8xf32> to vector<8x1xf32>
    %12 = vector.broadcast %11 : vector<8x1xf32> to vector<8x8xf32>
    %13 = arith.subf %9, %12 : vector<8x8xf32>
    %14 = math.exp %13 : vector<8x8xf32>
    %cst_7 = arith.constant dense<0.000000e+00> : vector<8xf32>
    %15 = vector.multi_reduction <add>, %14, %cst_7 [1] : vector<8x8xf32> to vector<8xf32>
    %16 = vector.shape_cast %15 : vector<8xf32> to vector<8x1xf32>
    %17 = tpu.reciprocal %16 {approx = true} : vector<8x1xf32> -> vector<8x1xf32>
    %18 = vector.broadcast %17 : vector<8x1xf32> to vector<8x8xf32>
    %19 = arith.mulf %14, %18 : vector<8x8xf32>
    %20 = arith.truncf %19 : vector<8x8xf32> to vector<8x8xbf16>
    %cst_8 = arith.constant dense<0.000000e+00> : vector<8x16xf32>
    %21 = tpu.matmul %20, %8, %cst_8 {dimension_numbers = #tpu.dot_dimension_numbers<[1], [0], [0], [1], [0, 0, 1, 1], [], []>} : vector<8x8xbf16>, vector<8x16xbf16>, vector<8x16xf32> -> vector<8x16xf32>
    %22 = arith.truncf %21 : vector<8x16xf32> to vector<8x16xbf16>
    %23 = vector.extract_strided_slice %2 {offsets = [0, 0], sizes = [16, 32], strides = [1, 1]} : vector<32x32xbf16> to vector<16x32xbf16>
    %cst_9 = arith.constant dense<0.000000e+00> : vector<8x32xf32>
    %24 = tpu.matmul %22, %23, %cst_9 {dimension_numbers = #tpu.dot_dimension_numbers<[1], [0], [0], [1], [0, 0, 1, 1], [], []>} : vector<8x16xbf16>, vector<16x32xbf16>, vector<8x32xf32> -> vector<8x32xf32>
    %25 = arith.addf %3, %24 : vector<8x32xf32>
    %26 = vector.extract_strided_slice %1 {offsets = [0, 16], sizes = [8, 16], strides = [1, 1]} : vector<8x96xbf16> to vector<8x16xbf16>
    %cst_10 = arith.constant 2.500000e-01 : bf16
    %27 = vector.broadcast %cst_10 : bf16 to vector<8x16xbf16>
    %28 = arith.mulf %26, %27 : vector<8x16xbf16>
    %29 = vector.extract_strided_slice %1 {offsets = [0, 48], sizes = [8, 16], strides = [1, 1]} : vector<8x96xbf16> to vector<8x16xbf16>
    %30 = vector.extract_strided_slice %1 {offsets = [0, 80], sizes = [8, 16], strides = [1, 1]} : vector<8x96xbf16> to vector<8x16xbf16>
    %cst_11 = arith.constant dense<0.000000e+00> : vector<8x8xf32>
    %31 = tpu.matmul %28, %29, %cst_11 {dimension_numbers = #tpu.dot_dimension_numbers<[1], [1], [0], [0], [0, 0, 1, 0], [], []>} : vector<8x16xbf16>, vector<8x16xbf16>, vector<8x8xf32> -> vector<8x8xf32>
    %cst_12 = arith.constant dense<0xFF800000> : vector<8xf32>
    %32 = vector.multi_reduction <maximumf>, %31, %cst_12 [1] : vector<8x8xf32> to vector<8xf32>
    %33 = vector.shape_cast %32 : vector<8xf32> to vector<8x1xf32>
    %34 = vector.broadcast %33 : vector<8x1xf32> to vector<8x8xf32>
    %35 = arith.subf %31, %34 : vector<8x8xf32>
    %36 = math.exp %35 : vector<8x8xf32>
    %cst_13 = arith.constant dense<0.000000e+00> : vector<8xf32>
    %37 = vector.multi_reduction <add>, %36, %cst_13 [1] : vector<8x8xf32> to vector<8xf32>
    %38 = vector.shape_cast %37 : vector<8xf32> to vector<8x1xf32>
    %39 = tpu.reciprocal %38 {approx = true} : vector<8x1xf32> -> vector<8x1xf32>
    %40 = vector.broadcast %39 : vector<8x1xf32> to vector<8x8xf32>
    %41 = arith.mulf %36, %40 : vector<8x8xf32>
    %42 = arith.truncf %41 : vector<8x8xf32> to vector<8x8xbf16>
    %cst_14 = arith.constant dense<0.000000e+00> : vector<8x16xf32>
    %43 = tpu.matmul %42, %30, %cst_14 {dimension_numbers = #tpu.dot_dimension_numbers<[1], [0], [0], [1], [0, 0, 1, 1], [], []>} : vector<8x8xbf16>, vector<8x16xbf16>, vector<8x16xf32> -> vector<8x16xf32>
    %44 = arith.truncf %43 : vector<8x16xf32> to vector<8x16xbf16>
    %45 = vector.extract_strided_slice %2 {offsets = [16, 0], sizes = [16, 32], strides = [1, 1]} : vector<32x32xbf16> to vector<16x32xbf16>
    %cst_15 = arith.constant dense<0.000000e+00> : vector<8x32xf32>
    %46 = tpu.matmul %44, %45, %cst_15 {dimension_numbers = #tpu.dot_dimension_numbers<[1], [0], [0], [1], [0, 0, 1, 1], [], []>} : vector<8x16xbf16>, vector<16x32xbf16>, vector<8x32xf32> -> vector<8x32xf32>
    %47 = arith.addf %25, %46 : vector<8x32xf32>
    %c0_16 = arith.constant 0 : index
    %c0_17 = arith.constant 0 : index
    %48 = vector.load %arg4[%c0_16, %c0_17] : memref<1x32xf32, #tpu.memory_space<vmem>>, vector<1x32xf32>
    %49 = vector.broadcast %48 : vector<1x32xf32> to vector<8x32xf32>
    %50 = arith.addf %47, %49 : vector<8x32xf32>
    %c0_18 = arith.constant 0 : index
    %c0_19 = arith.constant 0 : index
    %c0_20 = arith.constant 0 : index
    %51 = vector.load %arg2[%c0_18, %c0_19, %c0_20] : memref<1x8x32xbf16, #tpu.memory_space<vmem>>, vector<1x8x32xbf16>
    %52 = vector.shape_cast %51 : vector<1x8x32xbf16> to vector<8x32xbf16>
    %53 = arith.extf %52 : vector<8x32xbf16> to vector<8x32xf32>
    %54 = arith.addf %50, %53 : vector<8x32xf32>
    %cst_21 = arith.constant dense<0.000000e+00> : vector<8xf32>
    %55 = vector.multi_reduction <add>, %54, %cst_21 [1] : vector<8x32xf32> to vector<8xf32>
    %56 = vector.shape_cast %55 : vector<8xf32> to vector<8x1xf32>
    %cst_22 = arith.constant 3.200000e+01 : f32
    %57 = vector.broadcast %cst_22 : f32 to vector<8x1xf32>
    %58 = arith.divf %56, %57 : vector<8x1xf32>
    %59 = vector.broadcast %58 : vector<8x1xf32> to vector<8x32xf32>
    %60 = arith.subf %54, %59 : vector<8x32xf32>
    %61 = arith.mulf %60, %60 : vector<8x32xf32>
    %cst_23 = arith.constant dense<0.000000e+00> : vector<8xf32>
    %62 = vector.multi_reduction <add>, %61, %cst_23 [1] : vector<8x32xf32> to vector<8xf32>
    %63 = vector.shape_cast %62 : vector<8xf32> to vector<8x1xf32>
    %cst_24 = arith.constant 3.200000e+01 : f32
    %64 = vector.broadcast %cst_24 : f32 to vector<8x1xf32>
    %65 = arith.divf %63, %64 : vector<8x1xf32>
    %66 = vector.broadcast %58 : vector<8x1xf32> to vector<8x32xf32>
    %67 = arith.subf %54, %66 : vector<8x32xf32>
    %cst_25 = arith.constant 9.99999996E-13 : f32
    %68 = vector.broadcast %cst_25 : f32 to vector<8x1xf32>
    %69 = arith.addf %65, %68 : vector<8x1xf32>
    %70 = math.rsqrt %69 : vector<8x1xf32>
    %71 = vector.broadcast %70 : vector<8x1xf32> to vector<8x32xf32>
    %72 = arith.mulf %67, %71 : vector<8x32xf32>
    %c0_26 = arith.constant 0 : index
    %c0_27 = arith.constant 0 : index
    %73 = vector.load %arg5[%c0_26, %c0_27] : memref<1x32xf32, #tpu.memory_space<vmem>>, vector<1x32xf32>
    %74 = vector.broadcast %73 : vector<1x32xf32> to vector<8x32xf32>
    %75 = arith.mulf %72, %74 : vector<8x32xf32>
    %c0_28 = arith.constant 0 : index
    %c0_29 = arith.constant 0 : index
    %76 = vector.load %arg6[%c0_28, %c0_29] : memref<1x32xf32, #tpu.memory_space<vmem>>, vector<1x32xf32>
    %77 = vector.broadcast %76 : vector<1x32xf32> to vector<8x32xf32>
    %78 = arith.addf %75, %77 : vector<8x32xf32>
    %79 = arith.truncf %78 : vector<8x32xf32> to vector<8x32xbf16>
    %c0_30 = arith.constant 0 : index
    %c0_31 = arith.constant 0 : index
    %c0_32 = arith.constant 0 : index
    %80 = vector.load %arg7[%c0_30, %c0_31, %c0_32] : memref<1x8x32xbf16, #tpu.memory_space<vmem>>, vector<1x8x32xbf16>
    %81 = vector.shape_cast %80 : vector<1x8x32xbf16> to vector<8x32xbf16>
    %82 = vector.shape_cast %79 : vector<8x32xbf16> to vector<1x8x32xbf16>
    tpu.vector_store %arg7[%c0_30, %c0_31, %c0_32], %82 {strides = array<i32>} : memref<1x8x32xbf16, #tpu.memory_space<vmem>>, vector<1x8x32xbf16>,
    return
  }
  func.func @transform_0(%arg0: i32) -> (i32, i32, i32) {
    %c0_i32 = arith.constant 0 : i32
    %c0_i32_0 = arith.constant 0 : i32
    %c0_i32_1 = arith.constant 0 : i32
    return %arg0, %c0_i32, %c0_i32_0 : i32, i32, i32
  }
  func.func @transform_1(%arg0: i32) -> (i32, i32, i32) {
    %c0_i32 = arith.constant 0 : i32
    %c0_i32_0 = arith.constant 0 : i32
    %c0_i32_1 = arith.constant 0 : i32
    return %arg0, %c0_i32, %c0_i32_0 : i32, i32, i32
  }
  func.func @transform_2(%arg0: i32) -> (i32, i32) {
    %c0_i32 = arith.constant 0 : i32
    %c0_i32_0 = arith.constant 0 : i32
    %c0_i32_1 = arith.constant 0 : i32
    return %c0_i32, %c0_i32_0 : i32, i32
  }
  func.func @transform_3(%arg0: i32) -> (i32, i32) {
    %c0_i32 = arith.constant 0 : i32
    %c0_i32_0 = arith.constant 0 : i32
    %c0_i32_1 = arith.constant 0 : i32
    return %c0_i32, %c0_i32_0 : i32, i32
  }
  func.func @transform_4(%arg0: i32) -> (i32, i32) {
    %c0_i32 = arith.constant 0 : i32
    %c0_i32_0 = arith.constant 0 : i32
    %c0_i32_1 = arith.constant 0 : i32
    return %c0_i32, %c0_i32_0 : i32, i32
  }
  func.func @transform_5(%arg0: i32) -> (i32, i32) {
    %c0_i32 = arith.constant 0 : i32
    %c0_i32_0 = arith.constant 0 : i32
    %c0_i32_1 = arith.constant 0 : i32
    return %c0_i32, %c0_i32_0 : i32, i32
  }
  func.func @transform_6(%arg0: i32) -> (i32, i32, i32) {
    %c0_i32 = arith.constant 0 : i32
    %c0_i32_0 = arith.constant 0 : i32
    %c0_i32_1 = arith.constant 0 : i32
    return %arg0, %c0_i32, %c0_i32_0 : i32, i32, i32
  }
}

module attributes {stable_mosaic.version = 11 : i64} {
  func.func @kernel(%arg0: i32, %arg1: memref<16x64xbf16, #tpu.memory_space<vmem>>, %arg2: memref<64x32xbf16, #tpu.memory_space<vmem>>, %arg3: memref<1x32xf32, #tpu.memory_space<vmem>>, %arg4: memref<16x32xbf16, #tpu.memory_space<vmem>>, %arg5: memref<1x32xf32, #tpu.memory_space<vmem>>, %arg6: memref<1x32xf32, #tpu.memory_space<vmem>>, %arg7: memref<16x32xbf16, #tpu.memory_space<vmem>>) attributes {dimension_semantics = [#tpu.dimension_semantics<parallel>], iteration_bounds = array<i64: 1>, scalar_prefetch = 0 : i64, scratch_operands = 0 : i64, tpu.core_type = #tpu.core_type<tc>, window_params = [{transform_indices = @transform_0, window_bounds = array<i64: 16, 64>}, {pipeline_mode = #tpu.pipeline_mode<synchronous>, transform_indices = @transform_1, window_bounds = array<i64: 64, 32>}, {pipeline_mode = #tpu.pipeline_mode<synchronous>, transform_indices = @transform_2, window_bounds = array<i64: 1, 32>}, {transform_indices = @transform_3, window_bounds = array<i64: 16, 32>}, {pipeline_mode = #tpu.pipeline_mode<synchronous>, transform_indices = @transform_4, window_bounds = array<i64: 1, 32>}, {pipeline_mode = #tpu.pipeline_mode<synchronous>, transform_indices = @transform_5, window_bounds = array<i64: 1, 32>}, {transform_indices = @transform_6, window_bounds = array<i64: 16, 32>}]} {
    %c0 = arith.constant 0 : index
    %c0_0 = arith.constant 0 : index
    %0 = vector.load %arg1[%c0, %c0_0] : memref<16x64xbf16, #tpu.memory_space<vmem>>, vector<16x64xbf16>
    %c0_1 = arith.constant 0 : index
    %c0_2 = arith.constant 0 : index
    %1 = vector.load %arg2[%c0_1, %c0_2] : memref<64x32xbf16, #tpu.memory_space<vmem>>, vector<64x32xbf16>
    %cst = arith.constant dense<0.000000e+00> : vector<16x32xf32>
    %2 = tpu.matmul %0, %1, %cst {dimension_numbers = #tpu.dot_dimension_numbers<[1], [0], [0], [1], [0, 0, 1, 1], [], []>} : vector<16x64xbf16>, vector<64x32xbf16>, vector<16x32xf32> -> vector<16x32xf32>
    %c0_3 = arith.constant 0 : index
    %c0_4 = arith.constant 0 : index
    %3 = vector.load %arg3[%c0_3, %c0_4] : memref<1x32xf32, #tpu.memory_space<vmem>>, vector<1x32xf32>
    %4 = vector.broadcast %3 : vector<1x32xf32> to vector<16x32xf32>
    %5 = arith.addf %2, %4 : vector<16x32xf32>
    %c0_5 = arith.constant 0 : index
    %c0_6 = arith.constant 0 : index
    %6 = vector.load %arg4[%c0_5, %c0_6] : memref<16x32xbf16, #tpu.memory_space<vmem>>, vector<16x32xbf16>
    %7 = arith.extf %6 : vector<16x32xbf16> to vector<16x32xf32>
    %8 = arith.addf %5, %7 : vector<16x32xf32>
    %cst_7 = arith.constant dense<0.000000e+00> : vector<16xf32>
    %9 = vector.multi_reduction <add>, %8, %cst_7 [1] : vector<16x32xf32> to vector<16xf32>
    %10 = vector.shape_cast %9 : vector<16xf32> to vector<16x1xf32>
    %cst_8 = arith.constant 3.200000e+01 : f32
    %11 = vector.broadcast %cst_8 : f32 to vector<16x1xf32>
    %12 = arith.divf %10, %11 : vector<16x1xf32>
    %13 = vector.broadcast %12 : vector<16x1xf32> to vector<16x32xf32>
    %14 = arith.subf %8, %13 : vector<16x32xf32>
    %15 = arith.mulf %14, %14 : vector<16x32xf32>
    %cst_9 = arith.constant dense<0.000000e+00> : vector<16xf32>
    %16 = vector.multi_reduction <add>, %15, %cst_9 [1] : vector<16x32xf32> to vector<16xf32>
    %17 = vector.shape_cast %16 : vector<16xf32> to vector<16x1xf32>
    %cst_10 = arith.constant 3.200000e+01 : f32
    %18 = vector.broadcast %cst_10 : f32 to vector<16x1xf32>
    %19 = arith.divf %17, %18 : vector<16x1xf32>
    %20 = vector.broadcast %12 : vector<16x1xf32> to vector<16x32xf32>
    %21 = arith.subf %8, %20 : vector<16x32xf32>
    %cst_11 = arith.constant 9.99999996E-13 : f32
    %22 = vector.broadcast %cst_11 : f32 to vector<16x1xf32>
    %23 = arith.addf %19, %22 : vector<16x1xf32>
    %24 = math.rsqrt %23 : vector<16x1xf32>
    %25 = vector.broadcast %24 : vector<16x1xf32> to vector<16x32xf32>
    %26 = arith.mulf %21, %25 : vector<16x32xf32>
    %c0_12 = arith.constant 0 : index
    %c0_13 = arith.constant 0 : index
    %27 = vector.load %arg5[%c0_12, %c0_13] : memref<1x32xf32, #tpu.memory_space<vmem>>, vector<1x32xf32>
    %28 = vector.broadcast %27 : vector<1x32xf32> to vector<16x32xf32>
    %29 = arith.mulf %26, %28 : vector<16x32xf32>
    %c0_14 = arith.constant 0 : index
    %c0_15 = arith.constant 0 : index
    %30 = vector.load %arg6[%c0_14, %c0_15] : memref<1x32xf32, #tpu.memory_space<vmem>>, vector<1x32xf32>
    %31 = vector.broadcast %30 : vector<1x32xf32> to vector<16x32xf32>
    %32 = arith.addf %29, %31 : vector<16x32xf32>
    %33 = arith.truncf %32 : vector<16x32xf32> to vector<16x32xbf16>
    %c0_16 = arith.constant 0 : index
    %c0_17 = arith.constant 0 : index
    %34 = vector.load %arg7[%c0_16, %c0_17] : memref<16x32xbf16, #tpu.memory_space<vmem>>, vector<16x32xbf16>
    tpu.vector_store %arg7[%c0_16, %c0_17], %33 {strides = array<i32>} : memref<16x32xbf16, #tpu.memory_space<vmem>>, vector<16x32xbf16>,
    return
  }
  func.func @transform_0(%arg0: i32) -> (i32, i32) {
    %c0_i32 = arith.constant 0 : i32
    %c0_i32_0 = arith.constant 0 : i32
    return %arg0, %c0_i32 : i32, i32
  }
  func.func @transform_1(%arg0: i32) -> (i32, i32) {
    %c0_i32 = arith.constant 0 : i32
    %c0_i32_0 = arith.constant 0 : i32
    %c0_i32_1 = arith.constant 0 : i32
    return %c0_i32, %c0_i32_0 : i32, i32
  }
  func.func @transform_2(%arg0: i32) -> (i32, i32) {
    %c0_i32 = arith.constant 0 : i32
    %c0_i32_0 = arith.constant 0 : i32
    %c0_i32_1 = arith.constant 0 : i32
    return %c0_i32, %c0_i32_0 : i32, i32
  }
  func.func @transform_3(%arg0: i32) -> (i32, i32) {
    %c0_i32 = arith.constant 0 : i32
    %c0_i32_0 = arith.constant 0 : i32
    return %arg0, %c0_i32 : i32, i32
  }
  func.func @transform_4(%arg0: i32) -> (i32, i32) {
    %c0_i32 = arith.constant 0 : i32
    %c0_i32_0 = arith.constant 0 : i32
    %c0_i32_1 = arith.constant 0 : i32
    return %c0_i32, %c0_i32_0 : i32, i32
  }
  func.func @transform_5(%arg0: i32) -> (i32, i32) {
    %c0_i32 = arith.constant 0 : i32
    %c0_i32_0 = arith.constant 0 : i32
    %c0_i32_1 = arith.constant 0 : i32
    return %c0_i32, %c0_i32_0 : i32, i32
  }
  func.func @transform_6(%arg0: i32) -> (i32, i32) {
    %c0_i32 = arith.constant 0 : i32
    %c0_i32_0 = arith.constant 0 : i32
    return %arg0, %c0_i32 : i32, i32
  }
}

module attributes {stable_mosaic.version = 11 : i64} {
  func.func @kernel(%arg0: i32, %arg1: i32, %arg2: i32, %arg3: memref<16x32xbf16, #tpu.memory_space<vmem>>, %arg4: memref<32x64xbf16, #tpu.memory_space<vmem>>, %arg5: memref<1x64xf32, #tpu.memory_space<vmem>>, %arg6: memref<16x64xf32, #tpu.memory_space<vmem>>, %arg7: memref<16x1xf32, #tpu.memory_space<vmem>>, %arg8: memref<16x1xf32, #tpu.memory_space<vmem>>) attributes {dimension_semantics = [#tpu.dimension_semantics<parallel>, #tpu.dimension_semantics<arbitrary>, #tpu.dimension_semantics<arbitrary>], iteration_bounds = array<i64: 1, 2, 1>, scalar_prefetch = 0 : i64, scratch_operands = 2 : i64, tpu.core_type = #tpu.core_type<tc>, window_params = [{transform_indices = @transform_0, window_bounds = array<i64: 16, 32>}, {transform_indices = @transform_1, window_bounds = array<i64: 32, 64>}, {transform_indices = @transform_2, window_bounds = array<i64: 1, 64>}, {transform_indices = @transform_3, window_bounds = array<i64: 16, 64>}]} {
    %c0 = arith.constant 0 : index
    %c0_0 = arith.constant 0 : index
    %0 = vector.load %arg3[%c0, %c0_0] : memref<16x32xbf16, #tpu.memory_space<vmem>>, vector<16x32xbf16>
    %c0_1 = arith.constant 0 : index
    %c0_2 = arith.constant 0 : index
    %1 = vector.load %arg4[%c0_1, %c0_2] : memref<32x64xbf16, #tpu.memory_space<vmem>>, vector<32x64xbf16>
    %cst = arith.constant dense<0.000000e+00> : vector<16x64xf32>
    %2 = tpu.matmul %0, %1, %cst {dimension_numbers = #tpu.dot_dimension_numbers<[1], [0], [0], [1], [0, 0, 1, 1], [], []>} : vector<16x32xbf16>, vector<32x64xbf16>, vector<16x64xf32> -> vector<16x64xf32>
    %c0_3 = arith.constant 0 : index
    %c0_4 = arith.constant 0 : index
    %3 = vector.load %arg5[%c0_3, %c0_4] : memref<1x64xf32, #tpu.memory_space<vmem>>, vector<1x64xf32>
    %4 = vector.broadcast %3 : vector<1x64xf32> to vector<16x64xf32>
    %5 = arith.addf %2, %4 : vector<16x64xf32>
    %c0_i32 = arith.constant 0 : i32
    %6 = arith.cmpi eq, %arg1, %c0_i32 : i32
    %c0_i32_5 = arith.constant 0 : i32
    %7 = arith.cmpi eq, %arg2, %c0_i32_5 : i32
    %8 = arith.andi %6, %7 : i1
    %9 = arith.extui %8 : i1 to i32
    %c0_i32_6 = arith.constant 0 : i32
    %10 = arith.cmpi ne, %9, %c0_i32_6 : i32
    scf.if %10 {
      %cst_10 = arith.constant 0xFF800000 : f32
      %17 = vector.broadcast %cst_10 : f32 to vector<16x1xf32>
      %c0_11 = arith.constant 0 : index
      %c0_12 = arith.constant 0 : index
      %18 = vector.load %arg7[%c0_11, %c0_12] : memref<16x1xf32, #tpu.memory_space<vmem>>, vector<16x1xf32>
      tpu.vector_store %arg7[%c0_11, %c0_12], %17 {strides = array<i32>} : memref<16x1xf32, #tpu.memory_space<vmem>>, vector<16x1xf32>,
      %cst_13 = arith.constant 0.000000e+00 : f32
      %19 = vector.broadcast %cst_13 : f32 to vector<16x1xf32>
      %c0_14 = arith.constant 0 : index
      %c0_15 = arith.constant 0 : index
      %20 = vector.load %arg8[%c0_14, %c0_15] : memref<16x1xf32, #tpu.memory_space<vmem>>, vector<16x1xf32>
      tpu.vector_store %arg8[%c0_14, %c0_15], %19 {strides = array<i32>} : memref<16x1xf32, #tpu.memory_space<vmem>>, vector<16x1xf32>,
    } else {
    }
    %c0_i32_7 = arith.constant 0 : i32
    %11 = arith.cmpi eq, %arg1, %c0_i32_7 : i32
    %12 = arith.extui %11 : i1 to i32
    %c0_i32_8 = arith.constant 0 : i32
    %13 = arith.cmpi ne, %12, %c0_i32_8 : i32
    scf.if %13 {
      %c0_10 = arith.constant 0 : index
      %c0_11 = arith.constant 0 : index
      %17 = vector.load %arg7[%c0_10, %c0_11] : memref<16x1xf32, #tpu.memory_space<vmem>>, vector<16x1xf32>
      %cst_12 = arith.constant dense<0xFF800000> : vector<16xf32>
      %18 = vector.multi_reduction <maximumf>, %5, %cst_12 [1] : vector<16x64xf32> to vector<16xf32>
      %19 = vector.shape_cast %18 : vector<16xf32> to vector<16x1xf32>
      %20 = arith.maximumf %17, %19 : vector<16x1xf32>
      %c0_13 = arith.constant 0 : index
      %c0_14 = arith.constant 0 : index
      %21 = vector.load %arg8[%c0_13, %c0_14] : memref<16x1xf32, #tpu.memory_space<vmem>>, vector<16x1xf32>
      %22 = arith.subf %17, %20 : vector<16x1xf32>
      %23 = math.exp %22 : vector<16x1xf32>
      %24 = arith.mulf %21, %23 : vector<16x1xf32>
      %25 = vector.broadcast %20 : vector<16x1xf32> to vector<16x64xf32>
      %26 = arith.subf %5, %25 : vector<16x64xf32>
      %27 = math.exp %26 : vector<16x64xf32>
      %cst_15 = arith.constant dense<0.000000e+00> : vector<16xf32>
      %28 = vector.multi_reduction <add>, %27, %cst_15 [1] : vector<16x64xf32> to vector<16xf32>
      %29 = vector.shape_cast %28 : vector<16xf32> to vector<16x1xf32>
      %30 = arith.addf %24, %29 : vector<16x1xf32>
      %c0_16 = arith.constant 0 : index
      %c0_17 = arith.constant 0 : index
      %31 = vector.load %arg8[%c0_16, %c0_17] : memref<16x1xf32, #tpu.memory_space<vmem>>, vector<16x1xf32>
      tpu.vector_store %arg8[%c0_16, %c0_17], %30 {strides = array<i32>} : memref<16x1xf32, #tpu.memory_space<vmem>>, vector<16x1xf32>,
      %c0_18 = arith.constant 0 : index
      %c0_19 = arith.constant 0 : index
      %32 = vector.load %arg7[%c0_18, %c0_19] : memref<16x1xf32, #tpu.memory_space<vmem>>, vector<16x1xf32>
      tpu.vector_store %arg7[%c0_18, %c0_19], %20 {strides = array<i32>} : memref<16x1xf32, #tpu.memory_space<vmem>>, vector<16x1xf32>,
    } else {
    }
    %c1_i32 = arith.constant 1 : i32
    %14 = arith.cmpi eq, %arg1, %c1_i32 : i32
    %15 = arith.extui %14 : i1 to i32
    %c0_i32_9 = arith.constant 0 : i32
    %16 = arith.cmpi ne, %15, %c0_i32_9 : i32
    scf.if %16 {
      %c0_10 = arith.constant 0 : index
      %c0_11 = arith.constant 0 : index
      %17 = vector.load %arg7[%c0_10, %c0_11] : memref<16x1xf32, #tpu.memory_space<vmem>>, vector<16x1xf32>
      %c0_12 = arith.constant 0 : index
      %c0_13 = arith.constant 0 : index
      %18 = vector.load %arg8[%c0_12, %c0_13] : memref<16x1xf32, #tpu.memory_space<vmem>>, vector<16x1xf32>
      %19 = math.log %18 : vector<16x1xf32>
      %20 = arith.addf %17, %19 : vector<16x1xf32>
      %21 = vector.broadcast %20 : vector<16x1xf32> to vector<16x64xf32>
      %22 = arith.subf %5, %21 : vector<16x64xf32>
      %c0_14 = arith.constant 0 : index
      %c0_15 = arith.constant 0 : index
      %23 = vector.load %arg6[%c0_14, %c0_15] : memref<16x64xf32, #tpu.memory_space<vmem>>, vector<16x64xf32>
      tpu.vector_store %arg6[%c0_14, %c0_15], %22 {strides = array<i32>} : memref<16x64xf32, #tpu.memory_space<vmem>>, vector<16x64xf32>,
    } else {
    }
    return
  }
  func.func @transform_0(%arg0: i32, %arg1: i32, %arg2: i32) -> (i32, i32) {
    %c0_i32 = arith.constant 0 : i32
    %c0_i32_0 = arith.constant 0 : i32
    return %arg0, %c0_i32 : i32, i32
  }
  func.func @transform_1(%arg0: i32, %arg1: i32, %arg2: i32) -> (i32, i32) {
    %c0_i32 = arith.constant 0 : i32
    %c0_i32_0 = arith.constant 0 : i32
    return %c0_i32, %arg2 : i32, i32
  }
  func.func @transform_2(%arg0: i32, %arg1: i32, %arg2: i32) -> (i32, i32) {
    %c0_i32 = arith.constant 0 : i32
    %c0_i32_0 = arith.constant 0 : i32
    return %c0_i32, %arg2 : i32, i32
  }
  func.func @transform_3(%arg0: i32, %arg1: i32, %arg2: i32) -> (i32, i32) {
    %0 = arith.muli %arg2, %arg1 : i32
    %c0_i32 = arith.constant 0 : i32
    return %arg0, %0 : i32, i32
  }
}

</mosaic_0001>

<llo_original>
// kernel: bertlm_forward.10
$region0: #{bertlm_forward.10}
  #allocation0 [shape = 'u32[]', space=smem, size = 0x4, offset = 0x4, fixed_abs, tag = 'smem constant byte address 0x4 - core index']
  #allocation1 [shape = 'u32[72,128]{1,0:T(1,128)}', space=vmem, size = 0x9000, scoped, tag = 'internal scratch']
  %s0 = inlined_call_operand.vmem [shape: f32[16,32], index: 0, kind: input, shape index: {}]
  %s1 = inlined_call_operand.vmem [shape: f32[1,32], index: 1, kind: input, shape index: {}]
  %s2 = inlined_call_operand.vmem [shape: f32[1,32], index: 2, kind: input, shape index: {}]
  %s3 = inlined_call_operand.vmem [shape: bf16[16,32], index: 3, kind: output, shape index: {}]
  %s4 = sld [smem:[#allocation0]]
  $region22: #{bertlm_forward.10} parent=0
    _
  %s6 = ssub.s32 1, %s4
  %s7 = scalar_select 0, %s6, %s4
  // Predicated region
  $region2: #{bertlm_forward.10} parent=0 // pred_check
    _
  $region3: #{bertlm_forward.10} parent=0 // pred_check_branch
    %9 = sbr.rel (0) target = $region5
  $region4: #{bertlm_forward.10} parent=0 // pred_region
    _
  $region5: #{bertlm_forward.10} parent=0 // pred_fallthru
    _
  // Predicated region
  $region6: #{bertlm_forward.10} parent=0 // pred_check
    _
  $region7: #{bertlm_forward.10} parent=0 // pred_check_branch
    %11 = sbr.rel (0) target = $region9
  $region8: #{bertlm_forward.10} parent=0 // pred_region
    _
  $region9: #{bertlm_forward.10} parent=0 // pred_fallthru
    _
  // Predicated region
  $region10: #{bertlm_forward.10} parent=0 // pred_check
    _
  $region11: #{bertlm_forward.10} parent=0 // pred_check_branch
    %13 = sbr.rel (0) target = $region13
  $region12: #{bertlm_forward.10} parent=0 // pred_region
    _
  $region13: #{bertlm_forward.10} parent=0 // pred_fallthru
    _
  %v14 = vld [vmem:[%s0] sm:$0xff]
  %v15 = vld [vmem:[%s0 + $0x8] sm:$0xff]
  %vm16 = vcmask 261120
  %v17 = vsel %vm16, %v14, 0.0
  %18 = vadd.xlane.f32.xlu0 %v17
  %v19 = vpop.xlane.xlu0 %18
  %v20 = vsel %vm16, %v15, 0.0
  %21 = vadd.xlane.f32.xlu0 %v20
  %v22 = vpop.xlane.xlu0 %21
  %v23 = vrcp.pop 32.0
  %v24 = vmul.f32 32.0, %v23
  %v25 = vsub.f32 1.0, %v24
  %v26 = vmul.f32 %v23, %v25
  %v27 = vadd.f32 %v23, %v26
  %vm28 = vweird.f32 %v23
  %v29 = vsel %vm28, %v23, %v27
  %v30 = vmul.f32 %v19, %v29
  %v31 = vmul.f32 %v22, %v29
  %v32 = vsub.f32 %v14, %v30
  %v33 = vsub.f32 %v15, %v31
  %v34 = vmul.f32 %v32, %v32
  %v35 = vmul.f32 %v33, %v33
  %v36 = vsel %vm16, %v34, 0.0
  %37 = vadd.xlane.f32.xlu0 %v36
  %v38 = vpop.xlane.xlu0 %37
  %v39 = vsel %vm16, %v35, 0.0
  %40 = vadd.xlane.f32.xlu0 %v39
  %v41 = vpop.xlane.xlu0 %40
  %v42 = vmul.f32 %v38, %v29
  %v43 = vmul.f32 %v41, %v29
  %v44 = vadd.f32 %v42, 1e-12
  %v45 = vadd.f32 %v43, 1e-12
  %v46 = vrsqrt.pop %v44
  %v47 = vmul.f32 %v46, %v44
  %v48 = vmul.f32 %v47, %v46
  %v49 = vmul.f32 0.5, %v48
  %v50 = vsub.f32 1.5, %v49
  %v51 = vmul.f32 %v46, %v50
  %vm52 = vweird.f32 %v44
  %vm53 = vweird.f32 %v46
  %vm54 = vmor %vm52, %vm53
  %v55 = vsel %vm54, %v46, %v51
  %v56 = vrsqrt.pop %v45
  %v57 = vmul.f32 %v56, %v45
  %v58 = vmul.f32 %v57, %v56
  %v59 = vmul.f32 0.5, %v58
  %v60 = vsub.f32 1.5, %v59
  %v61 = vmul.f32 %v56, %v60
  %vm62 = vweird.f32 %v45
  %vm63 = vweird.f32 %v56
  %vm64 = vmor %vm62, %vm63
  %v65 = vsel %vm64, %v56, %v61
  %v66 = vmul.f32 %v32, %v55
  %v67 = vmul.f32 %v33, %v65
  %v68 = vld [vmem:[%s1] sm:$0x1]
  %v70 = vperm.slane %v68, 0
  %v72 = vmul.f32 %v66, %v70
  %v73 = vmul.f32 %v67, %v70
  %v74 = vld [vmem:[%s2] sm:$0x1]
  %v76 = vperm.slane %v74, 0
  %v78 = vadd.f32 %v72, %v76
  %v79 = vadd.f32 %v73, %v76
  %v80 = vpack.c.bf16 %v78, %v78
  %v81 = vpack.c.bf16 %v79, %v79
  %vm82 = vcmask 257024
  %83 = vst.msk [vmem:[%s3] sm:$0xf] %vm82, %v80
  %84 = vst.msk [vmem:[%s3 + $0x4] sm:$0xf] %vm82, %v81
  // Predicated region
  $region14: #{bertlm_forward.10} parent=0 // pred_check
    _
  $region15: #{bertlm_forward.10} parent=0 // pred_check_branch
    %86 = sbr.rel (0) target = $region17
  $region16: #{bertlm_forward.10} parent=0 // pred_region
    _
  $region17: #{bertlm_forward.10} parent=0 // pred_fallthru
    _
  // Predicated region
  $region18: #{bertlm_forward.10} parent=0 // pred_check
    _
  $region19: #{bertlm_forward.10} parent=0 // pred_check_branch
    %88 = sbr.rel (0) target = $region21
  $region20: #{bertlm_forward.10} parent=0 // pred_region
    _
  $region21: #{bertlm_forward.10} parent=0 // pred_fallthru
    _

// kernel: bertlm_forward.11
$region0: #{bertlm_forward.11}
  #allocation0 [shape = 'u32[]', space=smem, size = 0x4, offset = 0x4, fixed_abs, tag = 'smem constant byte address 0x4 - core index']
  #allocation1 [shape = 'u32[72,128]{1,0:T(1,128)}', space=vmem, size = 0x9000, scoped, tag = 'internal scratch']
  %s0 = inlined_call_operand.vmem [shape: bf16[16,32], index: 0, kind: input, shape index: {}]
  %s1 = inlined_call_operand.vmem [shape: bf16[32,96], index: 1, kind: input, shape index: {}]
  %s2 = inlined_call_operand.vmem [shape: f32[1,96], index: 2, kind: input, shape index: {}]
  %s3 = inlined_call_operand.vmem [shape: bf16[16,96], index: 3, kind: output, shape index: {}]
  %s4 = sld [smem:[#allocation0]]
  $region22: #{bertlm_forward.11} parent=0
    _
  %s6 = ssub.s32 1, %s4
  %s7 = scalar_select 0, %s6, %s4
  // Predicated region
  $region2: #{bertlm_forward.11} parent=0 // pred_check
    _
  $region3: #{bertlm_forward.11} parent=0 // pred_check_branch
    %9 = sbr.rel (0) target = $region5
  $region4: #{bertlm_forward.11} parent=0 // pred_region
    _
  $region5: #{bertlm_forward.11} parent=0 // pred_fallthru
    _
  // Predicated region
  $region6: #{bertlm_forward.11} parent=0 // pred_check
    _
  $region7: #{bertlm_forward.11} parent=0 // pred_check_branch
    %11 = sbr.rel (0) target = $region9
  $region8: #{bertlm_forward.11} parent=0 // pred_region
    _
  $region9: #{bertlm_forward.11} parent=0 // pred_fallthru
    _
  // Predicated region
  $region10: #{bertlm_forward.11} parent=0 // pred_check
    _
  $region11: #{bertlm_forward.11} parent=0 // pred_check_branch
    %13 = sbr.rel (0) target = $region13
  $region12: #{bertlm_forward.11} parent=0 // pred_region
    _
  $region13: #{bertlm_forward.11} parent=0 // pred_fallthru
    _
  %v15 = vld [vmem:[%s0] sm:$0xf]
  %v16 = vld [vmem:[%s0 + $0x4] sm:$0xf]
  %v17 = vld [vmem:[%s1] sm:$0xf]
  %v18 = vld [vmem:[%s1 + $0x4] sm:$0xf]
  %v19 = vld [vmem:[%s1 + $0x8] sm:$0xf]
  %v20 = vld [vmem:[%s1 + $0xc] sm:$0xf]
  %v21 = vld [vmem:[%s2] sm:$0x1]
  %v23 = vperm.slane %v21, 0
  %v27 = vunpack.c.l.b16 %v15
  %v28 = vunpack.c.l.b16 %v16
  %v29 = vpack.c.b16 %v28, %v27
  %v34 = vunpack.c.l.b16 %v17
  %v35 = vunpack.c.l.b16 %v18
  %v36 = vunpack.c.l.b16 %v19
  %v37 = vunpack.c.l.b16 %v20
  %v38 = vpack.c.b16 %v35, %v34
  %v39 = vpack.c.b16 %v37, %v36
  %vm42 = vcmask 261120
  %v44 = vsel %vm42, %v29, 0
  %46 = vmatpush.bf16.msra.mxu0 0
  %47 = vmatpush.bf16.msra.mxu0 0
  %48 = vmatpush.bf16.msra.mxu0 0
  %49 = vmatpush.bf16.msra.mxu0 0
  %50 = vmatpush.bf16.msra.mxu0 0
  %51 = vmatpush.bf16.msra.mxu0 0
  %52 = vmatpush.bf16.msra.mxu0 %v39
  %53 = vmatpush.bf16.msra.mxu0 %v38
  %54 = vmatmul.bf16.gmra.mxu0 %v44
  %v55 = vpop.f32.mrf.mxu0
  %v56 = vadd.f32 %v23, %v55
  %v57 = vpop.f32.mrf.mxu0
  %v58 = vadd.f32 %v23, %v57
  %59 = vdwg.mxu0
  %v60 = vpack.c.bf16 %v56, %v56
  %v61 = vpack.c.bf16 %v58, %v58
  %vm62 = vcmask 781312
  %63 = vst.msk [vmem:[%s3] sm:$0xf] %vm62, %v60
  %64 = vst.msk [vmem:[%s3 + $0x4] sm:$0xf] %vm62, %v61
  // Predicated region
  $region14: #{bertlm_forward.11} parent=0 // pred_check
    _
  $region15: #{bertlm_forward.11} parent=0 // pred_check_branch
    %66 = sbr.rel (0) target = $region17
  $region16: #{bertlm_forward.11} parent=0 // pred_region
    _
  $region17: #{bertlm_forward.11} parent=0 // pred_fallthru
    _
  // Predicated region
  $region18: #{bertlm_forward.11} parent=0 // pred_check
    _
  $region19: #{bertlm_forward.11} parent=0 // pred_check_branch
    %68 = sbr.rel (0) target = $region21
  $region20: #{bertlm_forward.11} parent=0 // pred_region
    _
  $region21: #{bertlm_forward.11} parent=0 // pred_fallthru
    _

// kernel: bertlm_forward.13
$region0: #{bertlm_forward.13}
  #allocation0 [shape = 'u32[]', space=smem, size = 0x4, offset = 0x4, fixed_abs, tag = 'smem constant byte address 0x4 - core index']
  #allocation1 [shape = 'u32[72,128]{1,0:T(1,128)}', space=vmem, size = 0x9000, scoped, tag = 'internal scratch']
  %s0 = inlined_call_operand.vmem [shape: bf16[16,32], index: 0, kind: input, shape index: {}]
  %s1 = inlined_call_operand.vmem [shape: bf16[32,64], index: 1, kind: input, shape index: {}]
  %s2 = inlined_call_operand.vmem [shape: f32[1,64], index: 2, kind: input, shape index: {}]
  %s3 = inlined_call_operand.vmem [shape: bf16[16,64], index: 3, kind: output, shape index: {}]
  %s4 = sld [smem:[#allocation0]]
  $region22: #{bertlm_forward.13} parent=0
    _
  %s6 = ssub.s32 1, %s4
  %s7 = scalar_select 0, %s6, %s4
  // Predicated region
  $region2: #{bertlm_forward.13} parent=0 // pred_check
    _
  $region3: #{bertlm_forward.13} parent=0 // pred_check_branch
    %9 = sbr.rel (0) target = $region5
  $region4: #{bertlm_forward.13} parent=0 // pred_region
    _
  $region5: #{bertlm_forward.13} parent=0 // pred_fallthru
    _
  // Predicated region
  $region6: #{bertlm_forward.13} parent=0 // pred_check
    _
  $region7: #{bertlm_forward.13} parent=0 // pred_check_branch
    %11 = sbr.rel (0) target = $region9
  $region8: #{bertlm_forward.13} parent=0 // pred_region
    _
  $region9: #{bertlm_forward.13} parent=0 // pred_fallthru
    _
  // Predicated region
  $region10: #{bertlm_forward.13} parent=0 // pred_check
    _
  $region11: #{bertlm_forward.13} parent=0 // pred_check_branch
    %13 = sbr.rel (0) target = $region13
  $region12: #{bertlm_forward.13} parent=0 // pred_region
    _
  $region13: #{bertlm_forward.13} parent=0 // pred_fallthru
    _
  %v15 = vld [vmem:[%s0] sm:$0xf]
  %v16 = vld [vmem:[%s0 + $0x4] sm:$0xf]
  %v17 = vld [vmem:[%s1] sm:$0xf]
  %v18 = vld [vmem:[%s1 + $0x4] sm:$0xf]
  %v19 = vld [vmem:[%s1 + $0x8] sm:$0xf]
  %v20 = vld [vmem:[%s1 + $0xc] sm:$0xf]
  %v21 = vld [vmem:[%s2] sm:$0x1]
  %v23 = vperm.slane %v21, 0
  %v27 = vunpack.c.l.b16 %v15
  %v28 = vunpack.c.l.b16 %v16
  %v29 = vpack.c.b16 %v28, %v27
  %v34 = vunpack.c.l.b16 %v17
  %v35 = vunpack.c.l.b16 %v18
  %v36 = vunpack.c.l.b16 %v19
  %v37 = vunpack.c.l.b16 %v20
  %v38 = vpack.c.b16 %v35, %v34
  %v39 = vpack.c.b16 %v37, %v36
  %vm42 = vcmask 261120
  %v44 = vsel %vm42, %v29, 0
  %46 = vmatpush.bf16.msra.mxu0 0
  %47 = vmatpush.bf16.msra.mxu0 0
  %48 = vmatpush.bf16.msra.mxu0 0
  %49 = vmatpush.bf16.msra.mxu0 0
  %50 = vmatpush.bf16.msra.mxu0 0
  %51 = vmatpush.bf16.msra.mxu0 0
  %52 = vmatpush.bf16.msra.mxu0 %v39
  %53 = vmatpush.bf16.msra.mxu0 %v38
  %54 = vmatmul.bf16.gmra.mxu0 %v44
  %v55 = vpop.f32.mrf.mxu0
  %v56 = vadd.f32 %v23, %v55
  %v57 = vpop.f32.mrf.mxu0
  %v58 = vadd.f32 %v23, %v57
  %59 = vdwg.mxu0
  %v60 = vmul.f32 %v56, 0.5
  %v61 = vmul.f32 %v58, 0.5
  %v62 = vmul.f32 %v56, 0.044715
  %v63 = vmul.f32 %v58, 0.044715
  %v64 = vmul.f32 %v62, %v56
  %v65 = vmul.f32 %v63, %v58
  %v66 = vmul.f32 %v64, %v56
  %v67 = vmul.f32 %v65, %v58
  %v68 = vadd.f32 %v56, %v66
  %v69 = vadd.f32 %v58, %v67
  %v70 = vmul.f32 %v68, 0.7978846
  %v71 = vmul.f32 %v69, 0.7978846
  %v72 = vtanh.pop %v70
  %v73 = vtanh.pop %v71
  %v74 = vadd.f32 %v72, 1.0
  %v75 = vadd.f32 %v73, 1.0
  %v76 = vmul.f32 %v60, %v74
  %v77 = vmul.f32 %v61, %v75
  %v78 = vpack.c.bf16 %v76, %v76
  %v79 = vpack.c.bf16 %v77, %v77
  %vm80 = vcmask 519168
  %81 = vst.msk [vmem:[%s3] sm:$0xf] %vm80, %v78
  %82 = vst.msk [vmem:[%s3 + $0x4] sm:$0xf] %vm80, %v79
  // Predicated region
  $region14: #{bertlm_forward.13} parent=0 // pred_check
    _
  $region15: #{bertlm_forward.13} parent=0 // pred_check_branch
    %84 = sbr.rel (0) target = $region17
  $region16: #{bertlm_forward.13} parent=0 // pred_region
    _
  $region17: #{bertlm_forward.13} parent=0 // pred_fallthru
    _
  // Predicated region
  $region18: #{bertlm_forward.13} parent=0 // pred_check
    _
  $region19: #{bertlm_forward.13} parent=0 // pred_check_branch
    %86 = sbr.rel (0) target = $region21
  $region20: #{bertlm_forward.13} parent=0 // pred_region
    _
  $region21: #{bertlm_forward.13} parent=0 // pred_fallthru
    _

// kernel: bertlm_forward.12
$region0: #{bertlm_forward.12}
  #allocation0 [shape = 'u32[]', space=smem, size = 0x4, offset = 0x4, fixed_abs, tag = 'smem constant byte address 0x4 - core index']
  #allocation1 [shape = 'u32[72,128]{1,0:T(1,128)}', space=vmem, size = 0x9000, scoped, tag = 'internal scratch']
  %s0 = inlined_call_operand.vmem [shape: bf16[2,8,96], index: 0, kind: input, shape index: {}]
  %s1 = inlined_call_operand.vmem [shape: bf16[2,8,32], index: 1, kind: input, shape index: {}]
  %s2 = inlined_call_operand.vmem [shape: bf16[32,32], index: 2, kind: input, shape index: {}]
  %s3 = inlined_call_operand.vmem [shape: f32[1,32], index: 3, kind: input, shape index: {}]
  %s4 = inlined_call_operand.vmem [shape: f32[1,32], index: 4, kind: input, shape index: {}]
  %s5 = inlined_call_operand.vmem [shape: f32[1,32], index: 5, kind: input, shape index: {}]
  %s6 = inlined_call_operand.vmem [shape: bf16[2,8,32], index: 6, kind: output, shape index: {}]
  %s7 = sld [smem:[#allocation0]]
  $region57: #{bertlm_forward.12} parent=0
    _
  %s9 = ssub.s32 1, %s7
  %s10 = scalar_select 0, %s9, %s7
  loop: start=0, step=1, limit=4
  $region2: #{bertlm_forward.12} parent=0 // loop_pre_header
    _
  $region3: #{bertlm_forward.12} parent=0 // loop_header
    %s12 = sphi 0, %s16
    %p13 = scmp.ge.s32.totalorder %s12, 4
    %s22 = sphi 0, %s24
    %s25 = sphi 0, %s22
    %s26 = sphi 0, %s25
    %s42 = sphi 0, %s26
    %s48 = sphi 0, %s50
    %s51 = sphi 0, %s48
    %s52 = sphi 0, %s51
    %s68 = sphi 0, %s52
    %s72 = sphi 0, %s72
    %s74 = sphi 0, %s72
    %s75 = sphi 0, %s74
    %s89 = sphi 0, %s75
    %s93 = sphi 0, %s93
    %s95 = sphi 0, %s93
    %s96 = sphi 0, %s95
    %s110 = sphi 0, %s96
    %s114 = sphi 0, %s114
    %s116 = sphi 0, %s114
    %s117 = sphi 0, %s116
    %s131 = sphi 0, %s117
    %s135 = sphi 0, %s135
    %s137 = sphi 0, %s135
    %s138 = sphi 0, %s137
    %s152 = sphi 0, %s138
    %s158 = sphi 0, %s160
    %s161 = sphi 0, %s158
    %s162 = sphi 0, %s161
    %s178 = sphi 0, %s162
  $region4: #{bertlm_forward.12} parent=0 // loop_header_branch
    %15 = sbr.rel (%p13) target = $region8
  $region5: #{bertlm_forward.12} parent=0 // loop_body
    %s17 = ssub.s32 %s12, 1
    %s18 = ssub.s32 %s12, 2
    %s19 = sadd.s32 %s12, 1
    %s20 = ssub.s32 %s12, %s19
    %p21 = scmp.eq.s32.totalorder %s20, 0
    %s23 = sadd.s32 %s22, 1
    %s24 = scalar_select %p21, %s22, %s23
    %p27 = pneg %p21
    %p28 = scmp.eq.s32.totalorder %s12, 1
    %p29 = por %p27, %p28
    %p30 = scmp.ne.s32.totalorder %s22, %s25
    %p31 = scmp.eq.s32.totalorder %s12, 0
    %p32 = por %p30, %p31
    %p33 = scmp.ne.s32.totalorder %s22, %s25
    %p34 = scmp.eq.s32.totalorder %s17, 1
    %p35 = por %p33, %p34
    %p36 = scmp.ne.s32.totalorder %s25, %s26
    %p37 = scmp.eq.s32.totalorder %s17, 0
    %p38 = por %p36, %p37
    %p39 = scmp.ne.s32.totalorder %s25, %s26
    %p40 = scmp.eq.s32.totalorder %s18, 1
    %p41 = por %p39, %p40
    %p43 = scmp.ne.s32.totalorder %s26, %s42
    %p44 = scmp.eq.s32.totalorder %s18, 0
    %p45 = por %p43, %p44
    %s46 = ssub.s32 %s12, %s19
    %p47 = scmp.eq.s32.totalorder %s46, 0
    %s49 = sadd.s32 %s48, 1
    %s50 = scalar_select %p47, %s48, %s49
    %p53 = pneg %p47
    %p54 = scmp.eq.s32.totalorder %s12, 1
    %p55 = por %p53, %p54
    %p56 = scmp.ne.s32.totalorder %s48, %s51
    %p57 = scmp.eq.s32.totalorder %s12, 0
    %p58 = por %p56, %p57
    %p59 = scmp.ne.s32.totalorder %s48, %s51
    %p60 = scmp.eq.s32.totalorder %s17, 1
    %p61 = por %p59, %p60
    %p62 = scmp.ne.s32.totalorder %s51, %s52
    %p63 = scmp.eq.s32.totalorder %s17, 0
    %p64 = por %p62, %p63
    %p65 = scmp.ne.s32.totalorder %s51, %s52
    %p66 = scmp.eq.s32.totalorder %s18, 1
    %p67 = por %p65, %p66
    %p69 = scmp.ne.s32.totalorder %s52, %s68
    %p70 = scmp.eq.s32.totalorder %s18, 0
    %p71 = por %p69, %p70
    %s73 = sadd.s32 %s72, 1
    %p76 = scmp.eq.s32.totalorder %s12, 1
    %p77 = scmp.ne.s32.totalorder %s72, %s74
    %p78 = scmp.eq.s32.totalorder %s12, 0
    %p79 = por %p77, %p78
    %p80 = scmp.ne.s32.totalorder %s72, %s74
    %p81 = scmp.eq.s32.totalorder %s17, 1
    %p82 = por %p80, %p81
    %p83 = scmp.ne.s32.totalorder %s74, %s75
    %p84 = scmp.eq.s32.totalorder %s17, 0
    %p85 = por %p83, %p84
    %p86 = scmp.ne.s32.totalorder %s74, %s75
    %p87 = scmp.eq.s32.totalorder %s18, 1
    %p88 = por %p86, %p87
    %p90 = scmp.ne.s32.totalorder %s75, %s89
    %p91 = scmp.eq.s32.totalorder %s18, 0
    %p92 = por %p90, %p91
    %s94 = sadd.s32 %s93, 1
    %p97 = scmp.eq.s32.totalorder %s12, 1
    %p98 = scmp.ne.s32.totalorder %s93, %s95
    %p99 = scmp.eq.s32.totalorder %s12, 0
    %p100 = por %p98, %p99
    %p101 = scmp.ne.s32.totalorder %s93, %s95
    %p102 = scmp.eq.s32.totalorder %s17, 1
    %p103 = por %p101, %p102
    %p104 = scmp.ne.s32.totalorder %s95, %s96
    %p105 = scmp.eq.s32.totalorder %s17, 0
    %p106 = por %p104, %p105
    %p107 = scmp.ne.s32.totalorder %s95, %s96
    %p108 = scmp.eq.s32.totalorder %s18, 1
    %p109 = por %p107, %p108
    %p111 = scmp.ne.s32.totalorder %s96, %s110
    %p112 = scmp.eq.s32.totalorder %s18, 0
    %p113 = por %p111, %p112
    %s115 = sadd.s32 %s114, 1
    %p118 = scmp.eq.s32.totalorder %s12, 1
    %p119 = scmp.ne.s32.totalorder %s114, %s116
    %p120 = scmp.eq.s32.totalorder %s12, 0
    %p121 = por %p119, %p120
    %p122 = scmp.ne.s32.totalorder %s114, %s116
    %p123 = scmp.eq.s32.totalorder %s17, 1
    %p124 = por %p122, %p123
    %p125 = scmp.ne.s32.totalorder %s116, %s117
    %p126 = scmp.eq.s32.totalorder %s17, 0
    %p127 = por %p125, %p126
    %p128 = scmp.ne.s32.totalorder %s116, %s117
    %p129 = scmp.eq.s32.totalorder %s18, 1
    %p130 = por %p128, %p129
    %p132 = scmp.ne.s32.totalorder %s117, %s131
    %p133 = scmp.eq.s32.totalorder %s18, 0
    %p134 = por %p132, %p133
    %s136 = sadd.s32 %s135, 1
    %p139 = scmp.eq.s32.totalorder %s12, 1
    %p140 = scmp.ne.s32.totalorder %s135, %s137
    %p141 = scmp.eq.s32.totalorder %s12, 0
    %p142 = por %p140, %p141
    %p143 = scmp.ne.s32.totalorder %s135, %s137
    %p144 = scmp.eq.s32.totalorder %s17, 1
    %p145 = por %p143, %p144
    %p146 = scmp.ne.s32.totalorder %s137, %s138
    %p147 = scmp.eq.s32.totalorder %s17, 0
    %p148 = por %p146, %p147
    %p149 = scmp.ne.s32.totalorder %s137, %s138
    %p150 = scmp.eq.s32.totalorder %s18, 1
    %p151 = por %p149, %p150
    %p153 = scmp.ne.s32.totalorder %s138, %s152
    %p154 = scmp.eq.s32.totalorder %s18, 0
    %p155 = por %p153, %p154
    %s156 = ssub.s32 %s12, %s19
    %p157 = scmp.eq.s32.totalorder %s156, 0
    %s159 = sadd.s32 %s158, 1
    %s160 = scalar_select %p157, %s158, %s159
    %p163 = pneg %p157
    %p164 = scmp.eq.s32.totalorder %s12, 1
    %p165 = por %p163, %p164
    %p166 = scmp.ne.s32.totalorder %s158, %s161
    %p167 = scmp.eq.s32.totalorder %s12, 0
    %p168 = por %p166, %p167
    %p169 = scmp.ne.s32.totalorder %s158, %s161
    %p170 = scmp.eq.s32.totalorder %s17, 1
    %p171 = por %p169, %p170
    %p172 = scmp.ne.s32.totalorder %s161, %s162
    %p173 = scmp.eq.s32.totalorder %s17, 0
    %p174 = por %p172, %p173
    %p175 = scmp.ne.s32.totalorder %s161, %s162
    %p176 = scmp.eq.s32.totalorder %s18, 1
    %p177 = por %p175, %p176
    %p179 = scmp.ne.s32.totalorder %s162, %s178
    %p180 = scmp.eq.s32.totalorder %s18, 0
    %p181 = por %p179, %p180
    %p182 = scmp.le.s32.totalorder 1, %s12
    %p183 = scmp.lt.s32.totalorder %s12, 3
    %p184 = pnand %p182, %p183
    %p185 = pneg %p184
    // Predicated region
    $region9: #{bertlm_forward.12} parent=5 // pred_check
      _
    $region10: #{bertlm_forward.12} parent=5 // pred_check_branch
      %187 = sbr.rel (%p184) target = $region12
    $region11: #{bertlm_forward.12} parent=5 // pred_region
      %s188 = ssub.s32 %s12, 1
      // Predicated region
      $region13: #{bertlm_forward.12} parent=11 // pred_check
        %p189 = pneg %p85
      $region14: #{bertlm_forward.12} parent=11 // pred_check_branch
        %191 = sbr.rel (%p189) target = $region16
      $region15: #{bertlm_forward.12} parent=11 // pred_region
        _
      $region16: #{bertlm_forward.12} parent=11 // pred_fallthru
        _
      // Predicated region
      $region17: #{bertlm_forward.12} parent=11 // pred_check
        %p192 = pneg %p106
      $region18: #{bertlm_forward.12} parent=11 // pred_check_branch
        %194 = sbr.rel (%p192) target = $region20
      $region19: #{bertlm_forward.12} parent=11 // pred_region
        _
      $region20: #{bertlm_forward.12} parent=11 // pred_fallthru
        _
      // Predicated region
      $region21: #{bertlm_forward.12} parent=11 // pred_check
        %p195 = pneg %p127
      $region22: #{bertlm_forward.12} parent=11 // pred_check_branch
        %197 = sbr.rel (%p195) target = $region24
      $region23: #{bertlm_forward.12} parent=11 // pred_region
        _
      $region24: #{bertlm_forward.12} parent=11 // pred_fallthru
        _
      // Predicated region
      $region25: #{bertlm_forward.12} parent=11 // pred_check
        %p198 = pneg %p148
      $region26: #{bertlm_forward.12} parent=11 // pred_check_branch
        %200 = sbr.rel (%p198) target = $region28
      $region27: #{bertlm_forward.12} parent=11 // pred_region
        _
      $region28: #{bertlm_forward.12} parent=11 // pred_fallthru
        _
    $region12: #{bertlm_forward.12} parent=5 // pred_fallthru
      _
    %p201 = scmp.lt.s32.totalorder %s12, 2
    // Predicated region
    $region29: #{bertlm_forward.12} parent=5 // pred_check
      %p202 = pneg %p201
    $region30: #{bertlm_forward.12} parent=5 // pred_check_branch
      %204 = sbr.rel (%p202) target = $region32
    $region31: #{bertlm_forward.12} parent=5 // pred_region
      // Predicated region
      $region33: #{bertlm_forward.12} parent=31 // pred_check
        %p205 = pneg %p32
      $region34: #{bertlm_forward.12} parent=31 // pred_check_branch
        %207 = sbr.rel (%p205) target = $region36
      $region35: #{bertlm_forward.12} parent=31 // pred_region
        %p208 = scmp.lt.s32.totalorder %s12, 1
        %s209 = scalar_select %p208, %s12, 1
        %s210 = smul.addr %s209, 4
        %s211 = scalar_lea.vmem %s0, %s210
      $region36: #{bertlm_forward.12} parent=31 // pred_fallthru
        _
      // Predicated region
      $region37: #{bertlm_forward.12} parent=31 // pred_check
        %p212 = pneg %p58
      $region38: #{bertlm_forward.12} parent=31 // pred_check_branch
        %214 = sbr.rel (%p212) target = $region40
      $region39: #{bertlm_forward.12} parent=31 // pred_region
        %p215 = scmp.lt.s32.totalorder %s12, 1
        %s216 = scalar_select %p215, %s12, 1
        %s217 = smul.addr %s216, 4
        %s218 = scalar_lea.vmem %s1, %s217
      $region40: #{bertlm_forward.12} parent=31 // pred_fallthru
        _
    $region32: #{bertlm_forward.12} parent=5 // pred_fallthru
      _
    %p219 = scmp.le.s32.totalorder 1, %s12
    %p220 = scmp.lt.s32.totalorder %s12, 3
    %p221 = pnand %p219, %p220
    %p222 = pneg %p221
    // Predicated region
    $region41: #{bertlm_forward.12} parent=5 // pred_check
      _
    $region42: #{bertlm_forward.12} parent=5 // pred_check_branch
      %224 = sbr.rel (%p221) target = $region44
    $region43: #{bertlm_forward.12} parent=5 // pred_region
      %s225 = ssub.s32 %s12, 1
      %p226 = scmp.lt.s32.totalorder %s17, 1
      %s227 = scalar_select %p226, %s17, 1
      %s228 = smul.addr %s227, 4
      %s229 = scalar_lea.vmem %s0, %s228
      %p230 = pneg %p38
      %p231 = pneg %p35
      %p232 = scmp.lt.s32.totalorder %s17, 1
      %s233 = scalar_select %p232, %s17, 1
      %s234 = smul.addr %s233, 4
      %s235 = scalar_lea.vmem %s1, %s234
      %p236 = pneg %p64
      %p237 = pneg %p61
      %p238 = pneg %p85
      %p239 = pneg %p82
      %p240 = pneg %p106
      %p241 = pneg %p103
      %p242 = pneg %p127
      %p243 = pneg %p124
      %p244 = pneg %p148
      %p245 = pneg %p145
      %p246 = pneg %p174
      %p247 = pneg %p171
      %p248 = scmp.lt.s32.totalorder %s17, 1
      %s249 = scalar_select %p248, %s17, 1
      %s250 = smul.addr %s249, 4
      %s251 = scalar_lea.vmem %s6, %s250
      %p252 = scmp.lt.s32.totalorder %s17, 1
      %s253 = scalar_select %p252, %s17, 1
      %s254 = smul.addr %s253, 4
      %s255 = scalar_lea.vmem %s0, %s254
      %p256 = scmp.lt.s32.totalorder %s17, 1
      %s257 = scalar_select %p256, %s17, 1
      %s258 = smul.addr %s257, 4
      %s259 = scalar_lea.vmem %s1, %s258
      %p260 = scmp.lt.s32.totalorder %s17, 1
      %s261 = scalar_select %p260, %s17, 1
      %s262 = smul.addr %s261, 4
      %s263 = scalar_lea.vmem %s6, %s262
      %v265 = vld [vmem:[%s255] sm:$0xf]
      %v266 = vld [vmem:[%s2] sm:$0xf]
      %v267 = vld [vmem:[%s2 + $0x4] sm:$0xf]
      %v268 = vld [vmem:[%s2 + $0x8] sm:$0xf]
      %v269 = vld [vmem:[%s2 + $0xc] sm:$0xf]
      %v270 = vunpack.c.l.bf16 %v265
      %v271 = vmul.f32 %v270, 0.25
      %v272 = vpack.c.bf16 %v271, %v271
      %v274 = vunpack.c.l.b16 %v265
      %v275 = vpack.c.b16 %v274, %v274
      %276 = vrot.lane.b32.xlu0 %v275, 96
      %v277 = vpop.permute.xlu0 %276
      %vm278 = vcmask 130048
      %v280 = vsel %vm278, %v272, 0
      %v283 = vsel %vm278, %v277, 0
      %285 = vmatpush.bf16.xpose.msra.mxu0 0
      %286 = vmatpush.bf16.xpose.msra.mxu0 0
      %287 = vmatpush.bf16.xpose.msra.mxu0 0
      %288 = vmatpush.bf16.xpose.msra.mxu0 0
      %289 = vmatpush.bf16.xpose.msra.mxu0 0
      %290 = vmatpush.bf16.xpose.msra.mxu0 0
      %291 = vmatpush.bf16.xpose.msra.mxu0 0
      %292 = vmatpush.bf16.xpose.msra.mxu0 %v283
      %293 = vmatmul.bf16.gmra.mxu0 %v280
      %v294 = vpop.f32.mrf.mxu0
      %v295 = vadd.f32 0.0, %v294
      %v296 = vpop.f32.mrf.mxu0
      %297 = vdwg.mxu0
      %vm298 = vcmask 64512
      %v299 = vsel %vm298, %v295, -inf
      %300 = vmax.xlane.f32.xlu0 %v299
      %v301 = vpop.xlane.xlu0 %300
      %v302 = vsub.f32 %v295, %v301
      %v303 = vmul.f32 %v302, 1.442695
      %v304 = vpow.pop %v303
      %v305 = vsel %vm298, %v304, 0.0
      %306 = vadd.xlane.f32.xlu0 %v305
      %v307 = vpop.xlane.xlu0 %306
      %v308 = vrcp.pop %v307
      %v309 = vmul.f32 %v304, %v308
      %v310 = vpack.c.bf16 %v309, %v309
      %311 = vrot.lane.b32.xlu0 %v275, 64
      %v312 = vpop.permute.xlu0 %311
      %v314 = vsel %vm298, %v310, 0
      %vm316 = vcmask 1043456
      %v318 = vsel %vm316, %v312, 0
      %320 = vmatpush.bf16.msra.mxu0 0
      %321 = vmatpush.bf16.msra.mxu0 0
      %322 = vmatpush.bf16.msra.mxu0 0
      %323 = vmatpush.bf16.msra.mxu0 0
      %324 = vmatpush.bf16.msra.mxu0 0
      %325 = vmatpush.bf16.msra.mxu0 0
      %326 = vmatpush.bf16.msra.mxu0 0
      %327 = vmatpush.bf16.msra.mxu0 %v318
      %328 = vmatmul.bf16.gmra.mxu0 %v314
      %v329 = vpop.f32.mrf.mxu0
      %v330 = vadd.f32 0.0, %v329
      %v331 = vpop.f32.mrf.mxu0
      %332 = vdwg.mxu0
      %v333 = vpack.c.bf16 %v330, %v330
      %335 = vrot.lane.b32.xlu0 %v272, 112
      %v336 = vpop.permute.xlu0 %335
      %337 = vrot.lane.b32.xlu0 %v275, 80
      %v338 = vpop.permute.xlu0 %337
      %v340 = vsel %vm278, %v336, 0
      %v343 = vsel %vm278, %v338, 0
      %345 = vmatpush.bf16.xpose.msra.mxu0 0
      %346 = vmatpush.bf16.xpose.msra.mxu0 0
      %347 = vmatpush.bf16.xpose.msra.mxu0 0
      %348 = vmatpush.bf16.xpose.msra.mxu0 0
      %349 = vmatpush.bf16.xpose.msra.mxu0 0
      %350 = vmatpush.bf16.xpose.msra.mxu0 0
      %351 = vmatpush.bf16.xpose.msra.mxu0 0
      %352 = vmatpush.bf16.xpose.msra.mxu0 %v343
      %353 = vmatmul.bf16.gmra.mxu0 %v340
      %v354 = vpop.f32.mrf.mxu0
      %v355 = vadd.f32 0.0, %v354
      %v356 = vpop.f32.mrf.mxu0
      %357 = vdwg.mxu0
      %v358 = vsel %vm298, %v355, -inf
      %359 = vmax.xlane.f32.xlu0 %v358
      %v360 = vpop.xlane.xlu0 %359
      %v361 = vsub.f32 %v355, %v360
      %v362 = vmul.f32 %v361, 1.442695
      %v363 = vpow.pop %v362
      %v364 = vsel %vm298, %v363, 0.0
      %365 = vadd.xlane.f32.xlu0 %v364
      %v366 = vpop.xlane.xlu0 %365
      %v367 = vrcp.pop %v366
      %v368 = vmul.f32 %v363, %v367
      %v369 = vpack.c.bf16 %v368, %v368
      %370 = vrot.lane.b32.xlu0 %v275, 48
      %v371 = vpop.permute.xlu0 %370
      %v373 = vsel %vm298, %v369, 0
      %v376 = vsel %vm316, %v371, 0
      %378 = vmatpush.bf16.msra.mxu0 0
      %379 = vmatpush.bf16.msra.mxu0 0
      %380 = vmatpush.bf16.msra.mxu0 0
      %381 = vmatpush.bf16.msra.mxu0 0
      %382 = vmatpush.bf16.msra.mxu0 0
      %383 = vmatpush.bf16.msra.mxu0 0
      %384 = vmatpush.bf16.msra.mxu0 0
      %385 = vmatpush.bf16.msra.mxu0 %v376
      %386 = vmatmul.bf16.gmra.mxu0 %v373
      %v387 = vpop.f32.mrf.mxu0
      %v388 = vadd.f32 0.0, %v387
      %v389 = vpop.f32.mrf.mxu0
      %390 = vdwg.mxu0
      %v391 = vpack.c.bf16 %v388, %v388
      %v394 = vunpack.c.l.b16 %v268
      %v395 = vunpack.c.l.b16 %v269
      %v396 = vpack.c.b16 %v395, %v394
      %v399 = vsel %vm278, %v391, 0
      %401 = vmatpush.bf16.msra.mxu0 0
      %402 = vmatpush.bf16.msra.mxu0 0
      %403 = vmatpush.bf16.msra.mxu0 0
      %404 = vmatpush.bf16.msra.mxu0 0
      %405 = vmatpush.bf16.msra.mxu0 0
      %406 = vmatpush.bf16.msra.mxu0 0
      %407 = vmatpush.bf16.msra.mxu0 0
      %408 = vmatpush.bf16.msra.mxu0 %v396
      %409 = vmatmul.bf16.gmra.mxu0 %v399
      %v410 = vpop.f32.mrf.mxu0
      %v411 = vadd.f32 0.0, %v410
      %v412 = vpop.f32.mrf.mxu0
      %413 = vdwg.mxu0
      %v416 = vunpack.c.l.b16 %v266
      %v417 = vunpack.c.l.b16 %v267
      %v418 = vpack.c.b16 %v417, %v416
      %v421 = vsel %vm278, %v333, 0
      %423 = vmatpush.bf16.msra.mxu0 0
      %424 = vmatpush.bf16.msra.mxu0 0
      %425 = vmatpush.bf16.msra.mxu0 0
      %426 = vmatpush.bf16.msra.mxu0 0
      %427 = vmatpush.bf16.msra.mxu0 0
      %428 = vmatpush.bf16.msra.mxu0 0
      %429 = vmatpush.bf16.msra.mxu0 0
      %430 = vmatpush.bf16.msra.mxu0 %v418
      %431 = vmatmul.bf16.gmra.mxu0 %v421
      %v432 = vpop.f32.mrf.mxu0
      %v433 = vadd.f32 %v411, %v432
      %v434 = vpop.f32.mrf.mxu0
      %435 = vdwg.mxu0
      %v436 = vld [vmem:[%s3] sm:$0x1]
      %v438 = vperm.slane %v436, 0
      %v440 = vadd.f32 %v433, %v438
      %v441 = vld [vmem:[%s259] sm:$0xf]
      %v442 = vunpack.c.l.bf16 %v441
      %v443 = vadd.f32 %v440, %v442
      %vm444 = vcmask 261120
      %v445 = vsel %vm444, %v443, 0.0
      %446 = vadd.xlane.f32.xlu0 %v445
      %v447 = vpop.xlane.xlu0 %446
      %v448 = vrcp.pop 32.0
      %v449 = vmul.f32 32.0, %v448
      %v450 = vsub.f32 1.0, %v449
      %v451 = vmul.f32 %v448, %v450
      %v452 = vadd.f32 %v448, %v451
      %vm453 = vweird.f32 %v448
      %v454 = vsel %vm453, %v448, %v452
      %v455 = vmul.f32 %v447, %v454
      %v456 = vsub.f32 %v443, %v455
      %v457 = vmul.f32 %v456, %v456
      %v458 = vsel %vm444, %v457, 0.0
      %459 = vadd.xlane.f32.xlu0 %v458
      %v460 = vpop.xlane.xlu0 %459
      %v461 = vmul.f32 %v460, %v454
      %v462 = vadd.f32 %v461, 1e-12
      %v463 = vrsqrt.pop %v462
      %v464 = vmul.f32 %v463, %v462
      %v465 = vmul.f32 %v464, %v463
      %v466 = vmul.f32 0.5, %v465
      %v467 = vsub.f32 1.5, %v466
      %v468 = vmul.f32 %v463, %v467
      %vm469 = vweird.f32 %v462
      %vm470 = vweird.f32 %v463
      %vm471 = vmor %vm469, %vm470
      %v472 = vsel %vm471, %v463, %v468
      %v473 = vmul.f32 %v456, %v472
      %v474 = vld [vmem:[%s4] sm:$0x1]
      %v476 = vperm.slane %v474, 0
      %v478 = vmul.f32 %v473, %v476
      %v479 = vld [vmem:[%s5] sm:$0x1]
      %v481 = vperm.slane %v479, 0
      %v483 = vadd.f32 %v478, %v481
      %v484 = vpack.c.bf16 %v483, %v483
      %vm485 = vcmask 257024
      %486 = vst.msk [vmem:[%s263] sm:$0xf] %vm485, %v484
      %p487 = scmp.lt.s32.totalorder %s17, 1
      %s488 = scalar_select %p487, %s17, 1
      %s489 = smul.addr %s488, 4
      %s490 = scalar_lea.vmem %s6, %s489
      // Predicated region
      $region45: #{bertlm_forward.12} parent=43 // pred_check
        %p491 = pneg %p171
      $region46: #{bertlm_forward.12} parent=43 // pred_check_branch
        %493 = sbr.rel (%p491) target = $region48
      $region47: #{bertlm_forward.12} parent=43 // pred_region
        _
      $region48: #{bertlm_forward.12} parent=43 // pred_fallthru
        _
    $region44: #{bertlm_forward.12} parent=5 // pred_fallthru
      _
    %p494 = scmp.le.s32.totalorder 2, %s12
    // Predicated region
    $region49: #{bertlm_forward.12} parent=5 // pred_check
      %p495 = pneg %p494
    $region50: #{bertlm_forward.12} parent=5 // pred_check_branch
      %497 = sbr.rel (%p495) target = $region52
    $region51: #{bertlm_forward.12} parent=5 // pred_region
      %s498 = ssub.s32 %s12, 2
      // Predicated region
      $region53: #{bertlm_forward.12} parent=51 // pred_check
        %p499 = pneg %p177
      $region54: #{bertlm_forward.12} parent=51 // pred_check_branch
        %501 = sbr.rel (%p499) target = $region56
      $region55: #{bertlm_forward.12} parent=51 // pred_region
        %p502 = scmp.lt.s32.totalorder %s18, 1
        %s503 = scalar_select %p502, %s18, 1
        %s504 = smul.addr %s503, 4
        %s505 = scalar_lea.vmem %s6, %s504
      $region56: #{bertlm_forward.12} parent=51 // pred_fallthru
        _
    $region52: #{bertlm_forward.12} parent=5 // pred_fallthru
      _
  $region6: #{bertlm_forward.12} parent=0 // loop_footer
    %s16 = sadd.s32 1, %s12
  $region7: #{bertlm_forward.12} parent=0 // loop_footer_branch
    %11 = sbr.rel target = $region3
  $region8: #{bertlm_forward.12} parent=0 // loop_exit
    _

// kernel: bertlm_forward.14
$region0: #{bertlm_forward.14}
  #allocation0 [shape = 'u32[]', space=smem, size = 0x4, offset = 0x4, fixed_abs, tag = 'smem constant byte address 0x4 - core index']
  #allocation1 [shape = 'u32[72,128]{1,0:T(1,128)}', space=vmem, size = 0x9000, scoped, tag = 'internal scratch']
  %s0 = inlined_call_operand.vmem [shape: bf16[16,64], index: 0, kind: input, shape index: {}]
  %s1 = inlined_call_operand.vmem [shape: bf16[64,32], index: 1, kind: input, shape index: {}]
  %s2 = inlined_call_operand.vmem [shape: f32[1,32], index: 2, kind: input, shape index: {}]
  %s3 = inlined_call_operand.vmem [shape: bf16[16,32], index: 3, kind: input, shape index: {}]
  %s4 = inlined_call_operand.vmem [shape: f32[1,32], index: 4, kind: input, shape index: {}]
  %s5 = inlined_call_operand.vmem [shape: f32[1,32], index: 5, kind: input, shape index: {}]
  %s6 = inlined_call_operand.vmem [shape: bf16[16,32], index: 6, kind: output, shape index: {}]
  %s7 = sld [smem:[#allocation0]]
  $region34: #{bertlm_forward.14} parent=0
    _
  %s9 = ssub.s32 1, %s7
  %s10 = scalar_select 0, %s9, %s7
  // Predicated region
  $region2: #{bertlm_forward.14} parent=0 // pred_check
    _
  $region3: #{bertlm_forward.14} parent=0 // pred_check_branch
    %12 = sbr.rel (0) target = $region5
  $region4: #{bertlm_forward.14} parent=0 // pred_region
    _
  $region5: #{bertlm_forward.14} parent=0 // pred_fallthru
    _
  // Predicated region
  $region6: #{bertlm_forward.14} parent=0 // pred_check
    _
  $region7: #{bertlm_forward.14} parent=0 // pred_check_branch
    %14 = sbr.rel (0) target = $region9
  $region8: #{bertlm_forward.14} parent=0 // pred_region
    _
  $region9: #{bertlm_forward.14} parent=0 // pred_fallthru
    _
  // Predicated region
  $region10: #{bertlm_forward.14} parent=0 // pred_check
    _
  $region11: #{bertlm_forward.14} parent=0 // pred_check_branch
    %16 = sbr.rel (0) target = $region13
  $region12: #{bertlm_forward.14} parent=0 // pred_region
    _
  $region13: #{bertlm_forward.14} parent=0 // pred_fallthru
    _
  // Predicated region
  $region14: #{bertlm_forward.14} parent=0 // pred_check
    _
  $region15: #{bertlm_forward.14} parent=0 // pred_check_branch
    %18 = sbr.rel (0) target = $region17
  $region16: #{bertlm_forward.14} parent=0 // pred_region
    _
  $region17: #{bertlm_forward.14} parent=0 // pred_fallthru
    _
  // Predicated region
  $region18: #{bertlm_forward.14} parent=0 // pred_check
    _
  $region19: #{bertlm_forward.14} parent=0 // pred_check_branch
    %20 = sbr.rel (0) target = $region21
  $region20: #{bertlm_forward.14} parent=0 // pred_region
    _
  $region21: #{bertlm_forward.14} parent=0 // pred_fallthru
    _
  // Predicated region
  $region22: #{bertlm_forward.14} parent=0 // pred_check
    _
  $region23: #{bertlm_forward.14} parent=0 // pred_check_branch
    %22 = sbr.rel (0) target = $region25
  $region24: #{bertlm_forward.14} parent=0 // pred_region
    _
  $region25: #{bertlm_forward.14} parent=0 // pred_fallthru
    _
  %v24 = vld [vmem:[%s0] sm:$0xf]
  %v25 = vld [vmem:[%s0 + $0x4] sm:$0xf]
  %v26 = vld [vmem:[%s1] sm:$0xf]
  %v27 = vld [vmem:[%s1 + $0x4] sm:$0xf]
  %v28 = vld [vmem:[%s1 + $0x8] sm:$0xf]
  %v29 = vld [vmem:[%s1 + $0xc] sm:$0xf]
  %v30 = vld [vmem:[%s1 + $0x10] sm:$0xf]
  %v31 = vld [vmem:[%s1 + $0x14] sm:$0xf]
  %v32 = vld [vmem:[%s1 + $0x18] sm:$0xf]
  %v33 = vld [vmem:[%s1 + $0x1c] sm:$0xf]
  %v34 = vld [vmem:[%s2] sm:$0x1]
  %v36 = vperm.slane %v34, 0
  %v40 = vunpack.c.l.b16 %v24
  %v41 = vunpack.c.l.b16 %v25
  %v42 = vpack.c.b16 %v41, %v40
  %v51 = vunpack.c.l.b16 %v26
  %v52 = vunpack.c.l.b16 %v27
  %v53 = vunpack.c.l.b16 %v28
  %v54 = vunpack.c.l.b16 %v29
  %v55 = vunpack.c.l.b16 %v30
  %v56 = vunpack.c.l.b16 %v31
  %v57 = vunpack.c.l.b16 %v32
  %v58 = vunpack.c.l.b16 %v33
  %v59 = vpack.c.b16 %v52, %v51
  %v60 = vpack.c.b16 %v54, %v53
  %v61 = vpack.c.b16 %v56, %v55
  %v62 = vpack.c.b16 %v58, %v57
  %vm67 = vcmask 523264
  %v69 = vsel %vm67, %v42, 0
  %71 = vmatpush.bf16.msra.mxu0 0
  %72 = vmatpush.bf16.msra.mxu0 0
  %73 = vmatpush.bf16.msra.mxu0 0
  %74 = vmatpush.bf16.msra.mxu0 0
  %75 = vmatpush.bf16.msra.mxu0 %v62
  %76 = vmatpush.bf16.msra.mxu0 %v61
  %77 = vmatpush.bf16.msra.mxu0 %v60
  %78 = vmatpush.bf16.msra.mxu0 %v59
  %79 = vmatmul.bf16.gmra.mxu0 %v69
  %v80 = vpop.f32.mrf.mxu0
  %v81 = vadd.f32 %v36, %v80
  %v82 = vpop.f32.mrf.mxu0
  %v83 = vadd.f32 %v36, %v82
  %84 = vdwg.mxu0
  %v85 = vld [vmem:[%s3] sm:$0xf]
  %v86 = vld [vmem:[%s3 + $0x4] sm:$0xf]
  %v87 = vunpack.c.l.bf16 %v85
  %v88 = vunpack.c.l.bf16 %v86
  %v89 = vadd.f32 %v81, %v87
  %v90 = vadd.f32 %v83, %v88
  %vm91 = vcmask 261120
  %v92 = vsel %vm91, %v89, 0.0
  %93 = vadd.xlane.f32.xlu0 %v92
  %v94 = vpop.xlane.xlu0 %93
  %v95 = vsel %vm91, %v90, 0.0
  %96 = vadd.xlane.f32.xlu0 %v95
  %v97 = vpop.xlane.xlu0 %96
  %v98 = vrcp.pop 32.0
  %v99 = vmul.f32 32.0, %v98
  %v100 = vsub.f32 1.0, %v99
  %v101 = vmul.f32 %v98, %v100
  %v102 = vadd.f32 %v98, %v101
  %vm103 = vweird.f32 %v98
  %v104 = vsel %vm103, %v98, %v102
  %v105 = vmul.f32 %v94, %v104
  %v106 = vmul.f32 %v97, %v104
  %v107 = vsub.f32 %v89, %v105
  %v108 = vsub.f32 %v90, %v106
  %v109 = vmul.f32 %v107, %v107
  %v110 = vmul.f32 %v108, %v108
  %v111 = vsel %vm91, %v109, 0.0
  %112 = vadd.xlane.f32.xlu0 %v111
  %v113 = vpop.xlane.xlu0 %112
  %v114 = vsel %vm91, %v110, 0.0
  %115 = vadd.xlane.f32.xlu0 %v114
  %v116 = vpop.xlane.xlu0 %115
  %v117 = vmul.f32 %v113, %v104
  %v118 = vmul.f32 %v116, %v104
  %v119 = vadd.f32 %v117, 1e-12
  %v120 = vadd.f32 %v118, 1e-12
  %v121 = vrsqrt.pop %v119
  %v122 = vmul.f32 %v121, %v119
  %v123 = vmul.f32 %v122, %v121
  %v124 = vmul.f32 0.5, %v123
  %v125 = vsub.f32 1.5, %v124
  %v126 = vmul.f32 %v121, %v125
  %vm127 = vweird.f32 %v119
  %vm128 = vweird.f32 %v121
  %vm129 = vmor %vm127, %vm128
  %v130 = vsel %vm129, %v121, %v126
  %v131 = vrsqrt.pop %v120
  %v132 = vmul.f32 %v131, %v120
  %v133 = vmul.f32 %v132, %v131
  %v134 = vmul.f32 0.5, %v133
  %v135 = vsub.f32 1.5, %v134
  %v136 = vmul.f32 %v131, %v135
  %vm137 = vweird.f32 %v120
  %vm138 = vweird.f32 %v131
  %vm139 = vmor %vm137, %vm138
  %v140 = vsel %vm139, %v131, %v136
  %v141 = vmul.f32 %v107, %v130
  %v142 = vmul.f32 %v108, %v140
  %v143 = vld [vmem:[%s4] sm:$0x1]
  %v145 = vperm.slane %v143, 0
  %v147 = vmul.f32 %v141, %v145
  %v148 = vmul.f32 %v142, %v145
  %v149 = vld [vmem:[%s5] sm:$0x1]
  %v151 = vperm.slane %v149, 0
  %v153 = vadd.f32 %v147, %v151
  %v154 = vadd.f32 %v148, %v151
  %v155 = vpack.c.bf16 %v153, %v153
  %v156 = vpack.c.bf16 %v154, %v154
  %vm157 = vcmask 257024
  %158 = vst.msk [vmem:[%s6] sm:$0xf] %vm157, %v155
  %159 = vst.msk [vmem:[%s6 + $0x4] sm:$0xf] %vm157, %v156
  // Predicated region
  $region26: #{bertlm_forward.14} parent=0 // pred_check
    _
  $region27: #{bertlm_forward.14} parent=0 // pred_check_branch
    %161 = sbr.rel (0) target = $region29
  $region28: #{bertlm_forward.14} parent=0 // pred_region
    _
  $region29: #{bertlm_forward.14} parent=0 // pred_fallthru
    _
  // Predicated region
  $region30: #{bertlm_forward.14} parent=0 // pred_check
    _
  $region31: #{bertlm_forward.14} parent=0 // pred_check_branch
    %163 = sbr.rel (0) target = $region33
  $region32: #{bertlm_forward.14} parent=0 // pred_region
    _
  $region33: #{bertlm_forward.14} parent=0 // pred_fallthru
    _

// kernel: bertlm_forward.19
$region0: #{bertlm_forward.19}
  #allocation0 [shape = 'u32[]', space=smem, size = 0x4, offset = 0x4, fixed_abs, tag = 'smem constant byte address 0x4 - core index']
  #allocation1 [shape = 'u32[72,128]{1,0:T(1,128)}', space=vmem, size = 0x9000, scoped, tag = 'internal scratch']
  #allocation2 [shape = 'f32[16,1]{1,0:T(8,128)}', space=vmem, size = 0x2000, scoped, tag = 'scratch operand']
  #allocation3 [shape = 'f32[16,1]{1,0:T(8,128)}', space=vmem, size = 0x2000, scoped, tag = 'scratch operand']
  %s0 = inlined_call_operand.vmem [shape: bf16[16,32], index: 0, kind: input, shape index: {}]
  %s1 = inlined_call_operand.vmem [shape: bf16[32,64], index: 1, kind: input, shape index: {}]
  %s2 = inlined_call_operand.vmem [shape: f32[1,64], index: 2, kind: input, shape index: {}]
  %s3 = inlined_call_operand.hbm [shape: f32[16,64], index: 3, kind: output, shape index: {}]
  %s4 = sld [smem:[#allocation0]]
  $region57: #{bertlm_forward.19} parent=0
    _
  %s6 = ssub.s32 1, %s4
  %s7 = scalar_select 0, %s6, %s4
  $region1: #{bertlm_forward.19} parent=0
    #allocation4 [shape = 'u8[16384]{0}', space=vmem, size = 0x4000, scoped, tag = 'output window, operand 0']
    #allocation5 [shape = 's32[2]{0}', space=sflag, size = 0x8, scoped, tag = 'scoped memory for bertlm_forward.19']
    %8 = vsyncpa [#allocation5], 0
    %s9 = scalar_lea.sflag [#allocation5], 1
    %10 = vsyncpa %s9, 0
    loop: start=0, step=1, limit=4
    $region2: #{bertlm_forward.19} parent=1 // loop_pre_header
      _
    $region3: #{bertlm_forward.19} parent=1 // loop_header
      %s12 = sphi 0, %s16
      %p13 = scmp.ge.s32.totalorder %s12, 4
      %s19 = sphi 0, %s38
      %s20 = sphi 0, %s34
      %s21 = sphi 0, %s30
      %s22 = sphi 0, %s19
      %s23 = sphi 0, %s20
      %s24 = sphi 0, %s21
      %s25 = sphi 0, %s22
      %s26 = sphi 0, %s23
      %s27 = sphi 0, %s24
      %s41 = sphi 0, %s43
      %s44 = sphi 0, %s41
      %s45 = sphi 0, %s44
      %s61 = sphi 0, %s45
      %s67 = sphi 0, %s69
      %s70 = sphi 0, %s67
      %s71 = sphi 0, %s70
      %s87 = sphi 0, %s71
      %s93 = sphi 0, %s95
      %s96 = sphi 0, %s93
      %s97 = sphi 0, %s96
      %s113 = sphi 0, %s97
      %s123 = sphi 0, %s125
      %s126 = sphi 0, %s123
      %s127 = sphi 0, %s126
      %s143 = sphi 0, %s127
    $region4: #{bertlm_forward.19} parent=1 // loop_header_branch
      %15 = sbr.rel (%p13) target = $region8
    $region5: #{bertlm_forward.19} parent=1 // loop_body
      %s17 = ssub.s32 %s12, 1
      %s18 = ssub.s32 %s12, 2
      %s28 = sadd.s32 1, %s21
      %p29 = scmp.ge.s32.totalorder %s28, 1
      %s30 = scalar_select %p29, 0, %s28
      %s31 = sadd.s32 1, %s20
      %s32 = scalar_select %p29, %s31, %s20
      %p33 = scmp.ge.s32.totalorder %s32, 2
      %s34 = scalar_select %p33, 0, %s32
      %s35 = sadd.s32 1, %s19
      %s36 = scalar_select %p33, %s35, %s19
      %p37 = scmp.ge.s32.totalorder %s36, 1
      %s38 = scalar_select %p37, 0, %s36
      %s39 = ssub.s32 %s19, %s38
      %p40 = scmp.eq.s32.totalorder %s39, 0
      %s42 = sadd.s32 %s41, 1
      %s43 = scalar_select %p40, %s41, %s42
      %p46 = pneg %p40
      %p47 = scmp.eq.s32.totalorder %s12, 1
      %p48 = por %p46, %p47
      %p49 = scmp.ne.s32.totalorder %s41, %s44
      %p50 = scmp.eq.s32.totalorder %s12, 0
      %p51 = por %p49, %p50
      %p52 = scmp.ne.s32.totalorder %s41, %s44
      %p53 = scmp.eq.s32.totalorder %s17, 1
      %p54 = por %p52, %p53
      %p55 = scmp.ne.s32.totalorder %s44, %s45
      %p56 = scmp.eq.s32.totalorder %s17, 0
      %p57 = por %p55, %p56
      %p58 = scmp.ne.s32.totalorder %s44, %s45
      %p59 = scmp.eq.s32.totalorder %s18, 1
      %p60 = por %p58, %p59
      %p62 = scmp.ne.s32.totalorder %s45, %s61
      %p63 = scmp.eq.s32.totalorder %s18, 0
      %p64 = por %p62, %p63
      %s65 = ssub.s32 %s21, %s30
      %p66 = scmp.eq.s32.totalorder %s65, 0
      %s68 = sadd.s32 %s67, 1
      %s69 = scalar_select %p66, %s67, %s68
      %p72 = pneg %p66
      %p73 = scmp.eq.s32.totalorder %s12, 1
      %p74 = por %p72, %p73
      %p75 = scmp.ne.s32.totalorder %s67, %s70
      %p76 = scmp.eq.s32.totalorder %s12, 0
      %p77 = por %p75, %p76
      %p78 = scmp.ne.s32.totalorder %s67, %s70
      %p79 = scmp.eq.s32.totalorder %s17, 1
      %p80 = por %p78, %p79
      %p81 = scmp.ne.s32.totalorder %s70, %s71
      %p82 = scmp.eq.s32.totalorder %s17, 0
      %p83 = por %p81, %p82
      %p84 = scmp.ne.s32.totalorder %s70, %s71
      %p85 = scmp.eq.s32.totalorder %s18, 1
      %p86 = por %p84, %p85
      %p88 = scmp.ne.s32.totalorder %s71, %s87
      %p89 = scmp.eq.s32.totalorder %s18, 0
      %p90 = por %p88, %p89
      %s91 = ssub.s32 %s21, %s30
      %p92 = scmp.eq.s32.totalorder %s91, 0
      %s94 = sadd.s32 %s93, 1
      %s95 = scalar_select %p92, %s93, %s94
      %p98 = pneg %p92
      %p99 = scmp.eq.s32.totalorder %s12, 1
      %p100 = por %p98, %p99
      %p101 = scmp.ne.s32.totalorder %s93, %s96
      %p102 = scmp.eq.s32.totalorder %s12, 0
      %p103 = por %p101, %p102
      %p104 = scmp.ne.s32.totalorder %s93, %s96
      %p105 = scmp.eq.s32.totalorder %s17, 1
      %p106 = por %p104, %p105
      %p107 = scmp.ne.s32.totalorder %s96, %s97
      %p108 = scmp.eq.s32.totalorder %s17, 0
      %p109 = por %p107, %p108
      %p110 = scmp.ne.s32.totalorder %s96, %s97
      %p111 = scmp.eq.s32.totalorder %s18, 1
      %p112 = por %p110, %p111
      %p114 = scmp.ne.s32.totalorder %s97, %s113
      %p115 = scmp.eq.s32.totalorder %s18, 0
      %p116 = por %p114, %p115
      %s117 = smul.u32 %s21, %s20
      %s118 = smul.u32 %s30, %s34
      %s119 = ssub.s32 %s19, %s38
      %s120 = ssub.s32 %s117, %s118
      %s121 = sor.u32 %s119, %s120
      %p122 = scmp.eq.s32.totalorder %s121, 0
      %s124 = sadd.s32 %s123, 1
      %s125 = scalar_select %p122, %s123, %s124
      %p128 = pneg %p122
      %p129 = scmp.eq.s32.totalorder %s12, 1
      %p130 = por %p128, %p129
      %p131 = scmp.ne.s32.totalorder %s123, %s126
      %p132 = scmp.eq.s32.totalorder %s12, 0
      %p133 = por %p131, %p132
      %p134 = scmp.ne.s32.totalorder %s123, %s126
      %p135 = scmp.eq.s32.totalorder %s17, 1
      %p136 = por %p134, %p135
      %p137 = scmp.ne.s32.totalorder %s126, %s127
      %p138 = scmp.eq.s32.totalorder %s17, 0
      %p139 = por %p137, %p138
      %p140 = scmp.ne.s32.totalorder %s126, %s127
      %p141 = scmp.eq.s32.totalorder %s18, 1
      %p142 = por %p140, %p141
      %p144 = scmp.ne.s32.totalorder %s127, %s143
      %p145 = scmp.eq.s32.totalorder %s18, 0
      %p146 = por %p144, %p145
      %p147 = scmp.le.s32.totalorder 1, %s12
      %p148 = scmp.lt.s32.totalorder %s12, 3
      %p149 = pnand %p147, %p148
      %p150 = pneg %p149
      // Predicated region
      $region9: #{bertlm_forward.19} parent=5 // pred_check
        _
      $region10: #{bertlm_forward.19} parent=5 // pred_check_branch
        %152 = sbr.rel (%p149) target = $region12
      $region11: #{bertlm_forward.19} parent=5 // pred_region
        %s153 = ssub.s32 %s12, 1
        // Predicated region
        $region13: #{bertlm_forward.19} parent=11 // pred_check
          %p154 = pneg %p57
        $region14: #{bertlm_forward.19} parent=11 // pred_check_branch
          %156 = sbr.rel (%p154) target = $region16
        $region15: #{bertlm_forward.19} parent=11 // pred_region
          %s157 = smul.u32 2, %s22
          %p158 = scmp.lt.s32.totalorder %s157, 1
          %s159 = scalar_select %p158, %s157, 1
          %s160 = smul.addr %s159, 4
          %s161 = scalar_lea.vmem %s0, %s160
          %s162 = smul.u32 2, %s22
        $region16: #{bertlm_forward.19} parent=11 // pred_fallthru
          _
        // Predicated region
        $region17: #{bertlm_forward.19} parent=11 // pred_check
          %p163 = pneg %p83
        $region18: #{bertlm_forward.19} parent=11 // pred_check_branch
          %165 = sbr.rel (%p163) target = $region20
        $region19: #{bertlm_forward.19} parent=11 // pred_region
          %p166 = scmp.lt.s32.totalorder %s24, 0
          %s167 = scalar_select %p166, %s24, 0
          %s168 = smul.addr %s167, 4
          %s169 = scalar_lea.vmem %s1, %s168
        $region20: #{bertlm_forward.19} parent=11 // pred_fallthru
          _
        // Predicated region
        $region21: #{bertlm_forward.19} parent=11 // pred_check
          %p170 = pneg %p109
        $region22: #{bertlm_forward.19} parent=11 // pred_check_branch
          %172 = sbr.rel (%p170) target = $region24
        $region23: #{bertlm_forward.19} parent=11 // pred_region
          %p173 = scmp.lt.s32.totalorder %s24, 0
          %s174 = scalar_select %p173, %s24, 0
          %s175 = scalar_lea.vmem %s2, %s174
        $region24: #{bertlm_forward.19} parent=11 // pred_fallthru
          _
      $region12: #{bertlm_forward.19} parent=5 // pred_fallthru
        _
      %p176 = scmp.lt.s32.totalorder %s12, 2
      // Predicated region
      $region25: #{bertlm_forward.19} parent=5 // pred_check
        %p177 = pneg %p176
      $region26: #{bertlm_forward.19} parent=5 // pred_check_branch
        %179 = sbr.rel (%p177) target = $region28
      $region27: #{bertlm_forward.19} parent=5 // pred_region
        _
      $region28: #{bertlm_forward.19} parent=5 // pred_fallthru
        _
      %p180 = scmp.le.s32.totalorder 1, %s12
      %p181 = scmp.lt.s32.totalorder %s12, 3
      %p182 = pnand %p180, %p181
      %p183 = pneg %p182
      // Predicated region
      $region29: #{bertlm_forward.19} parent=5 // pred_check
        _
      $region30: #{bertlm_forward.19} parent=5 // pred_check_branch
        %185 = sbr.rel (%p182) target = $region32
      $region31: #{bertlm_forward.19} parent=5 // pred_region
        %s186 = ssub.s32 %s12, 1
        %s187 = smul.u32 2, %s22
        %p188 = scmp.lt.s32.totalorder %s187, 1
        %s189 = scalar_select %p188, %s187, 1
        %s190 = smul.addr %s189, 4
        %s191 = scalar_lea.vmem %s0, %s190
        %p192 = pneg %p57
        %p193 = pneg %p54
        %p194 = scmp.lt.s32.totalorder %s24, 0
        %s195 = scalar_select %p194, %s24, 0
        %s196 = smul.addr %s195, 4
        %s197 = scalar_lea.vmem %s1, %s196
        %p198 = pneg %p83
        %p199 = pneg %p80
        %p200 = scmp.lt.s32.totalorder %s24, 0
        %s201 = scalar_select %p200, %s24, 0
        %s202 = scalar_lea.vmem %s2, %s201
        %p203 = pneg %p109
        %p204 = pneg %p106
        %p205 = pneg %p139
        %p206 = pneg %p136
        %s207 = sand.u32 %s126, 1
        %s208 = scalar_lea.sflag [#allocation5], %s207
        %s209 = sand.u32 %s126, 1
        %s210 = smul.addr %s209, 16
        %s211 = scalar_lea.vmem [#allocation4], %s210
        %s212 = smul.u32 2, %s22
        %p213 = scmp.lt.s32.totalorder %s212, 1
        %s214 = scalar_select %p213, %s212, 1
        %s215 = smul.addr %s214, 4
        %s216 = scalar_lea.vmem %s0, %s215
        %s217 = smul.u32 2, %s22
        %p218 = scmp.lt.s32.totalorder %s24, 0
        %s219 = scalar_select %p218, %s24, 0
        %s220 = smul.addr %s219, 4
        %s221 = scalar_lea.vmem %s1, %s220
        %p222 = scmp.lt.s32.totalorder %s24, 0
        %s223 = scalar_select %p222, %s24, 0
        %s224 = scalar_lea.vmem %s2, %s223
        %s225 = smul.u32 %s24, %s23
        %s226 = smul.u32 2, %s22
        %v228 = vld [vmem:[%s216] sm:$0xf]
        %v229 = vld [vmem:[%s216 + $0x4] sm:$0xf]
        %v230 = vld [vmem:[%s221] sm:$0xf]
        %v231 = vld [vmem:[%s221 + $0x4] sm:$0xf]
        %v232 = vld [vmem:[%s221 + $0x8] sm:$0xf]
        %v233 = vld [vmem:[%s221 + $0xc] sm:$0xf]
        %v234 = vld [vmem:[%s224] sm:$0x1]
        %v236 = vperm.slane %v234, 0
        %v240 = vunpack.c.l.b16 %v228
        %v241 = vunpack.c.l.b16 %v229
        %v242 = vpack.c.b16 %v241, %v240
        %v247 = vunpack.c.l.b16 %v230
        %v248 = vunpack.c.l.b16 %v231
        %v249 = vunpack.c.l.b16 %v232
        %v250 = vunpack.c.l.b16 %v233
        %v251 = vpack.c.b16 %v248, %v247
        %v252 = vpack.c.b16 %v250, %v249
        %vm255 = vcmask 261120
        %v257 = vsel %vm255, %v242, 0
        %259 = vmatpush.bf16.msra.mxu0 0
        %260 = vmatpush.bf16.msra.mxu0 0
        %261 = vmatpush.bf16.msra.mxu0 0
        %262 = vmatpush.bf16.msra.mxu0 0
        %263 = vmatpush.bf16.msra.mxu0 0
        %264 = vmatpush.bf16.msra.mxu0 0
        %265 = vmatpush.bf16.msra.mxu0 %v252
        %266 = vmatpush.bf16.msra.mxu0 %v251
        %267 = vmatmul.bf16.gmra.mxu0 %v257
        %v268 = vpop.f32.mrf.mxu0
        %v269 = vadd.f32 %v236, %v268
        %v270 = vpop.f32.mrf.mxu0
        %v271 = vadd.f32 %v236, %v270
        %272 = vdwg.mxu0
        %p273 = scmp.eq.s32.totalorder %s23, 0
        %p274 = scmp.eq.s32.totalorder %s24, 0
        %p275 = pnand %p273, %p274
        %p276 = pneg %p275
        // Predicated region
        $region33: #{bertlm_forward.19} parent=31 // pred_check
          _
        $region34: #{bertlm_forward.19} parent=31 // pred_check_branch
          %278 = sbr.rel (%p275) target = $region36
        $region35: #{bertlm_forward.19} parent=31 // pred_region
          %vm279 = vcmask 7168
          %280 = vst.msk [vmem:[#allocation2] sm:$0xff] %vm279, -inf
          %281 = vst.msk [vmem:[#allocation2 + $0x8] sm:$0xff] %vm279, -inf
          %282 = vst.msk [vmem:[#allocation3] sm:$0xff] %vm279, 0.0
          %283 = vst.msk [vmem:[#allocation3 + $0x8] sm:$0xff] %vm279, 0.0
        $region36: #{bertlm_forward.19} parent=31 // pred_fallthru
          _
        // Predicated region
        $region37: #{bertlm_forward.19} parent=31 // pred_check
          %p284 = pneg %p273
        $region38: #{bertlm_forward.19} parent=31 // pred_check_branch
          %286 = sbr.rel (%p284) target = $region40
        $region39: #{bertlm_forward.19} parent=31 // pred_region
          %v287 = vld [vmem:[#allocation2] sm:$0xff]
          %v288 = vld [vmem:[#allocation2 + $0x8] sm:$0xff]
          %vm289 = vcmask 523264
          %v290 = vsel %vm289, %v269, -inf
          %291 = vmax.xlane.f32.xlu0 %v290
          %v292 = vpop.xlane.xlu0 %291
          %v293 = vsel %vm289, %v271, -inf
          %294 = vmax.xlane.f32.xlu0 %v293
          %v295 = vpop.xlane.xlu0 %294
          %v296 = vmax.f32 %v287, %v292
          %v297 = vmax.f32 %v288, %v295
          %v298 = vld [vmem:[#allocation3] sm:$0xff]
          %v299 = vld [vmem:[#allocation3 + $0x8] sm:$0xff]
          %v300 = vsub.f32 %v287, %v296
          %v301 = vsub.f32 %v288, %v297
          %v302 = vmul.f32 %v300, 1.442695
          %v303 = vpow.pop %v302
          %v304 = vmul.f32 %v301, 1.442695
          %v305 = vpow.pop %v304
          %v306 = vmul.f32 %v298, %v303
          %v307 = vmul.f32 %v299, %v305
          %309 = vset.pattern.permute.xlu0 0
          %310 = vperm.xlu0 %309, %v296
          %v311 = vpop.permute.xlu0 %310
          %314 = vset.pattern.permute.xlu0 0
          %315 = vperm.xlu0 %314, %v297
          %v316 = vpop.permute.xlu0 %315
          %v318 = vsub.f32 %v269, %v311
          %v319 = vsub.f32 %v271, %v316
          %v320 = vmul.f32 %v318, 1.442695
          %v321 = vpow.pop %v320
          %v322 = vmul.f32 %v319, 1.442695
          %v323 = vpow.pop %v322
          %v324 = vsel %vm289, %v321, 0.0
          %325 = vadd.xlane.f32.xlu0 %v324
          %v326 = vpop.xlane.xlu0 %325
          %v327 = vsel %vm289, %v323, 0.0
          %328 = vadd.xlane.f32.xlu0 %v327
          %v329 = vpop.xlane.xlu0 %328
          %v330 = vadd.f32 %v306, %v326
          %v331 = vadd.f32 %v307, %v329
          %vm332 = vcmask 7168
          %333 = vst.msk [vmem:[#allocation3] sm:$0xff] %vm332, %v330
          %334 = vst.msk [vmem:[#allocation3 + $0x8] sm:$0xff] %vm332, %v331
          %335 = vst.msk [vmem:[#allocation2] sm:$0xff] %vm332, %v296
          %336 = vst.msk [vmem:[#allocation2 + $0x8] sm:$0xff] %vm332, %v297
        $region40: #{bertlm_forward.19} parent=31 // pred_fallthru
          _
        %p337 = scmp.eq.s32.totalorder %s23, 1
        // Predicated region
        $region41: #{bertlm_forward.19} parent=31 // pred_check
          %p338 = pneg %p337
        $region42: #{bertlm_forward.19} parent=31 // pred_check_branch
          %340 = sbr.rel (%p338) target = $region44
        $region43: #{bertlm_forward.19} parent=31 // pred_region
          %v341 = vld [vmem:[#allocation2] sm:$0xff]
          %v342 = vld [vmem:[#allocation2 + $0x8] sm:$0xff]
          %v343 = vld [vmem:[#allocation3] sm:$0xff]
          %v344 = vld [vmem:[#allocation3 + $0x8] sm:$0xff]
          %v345 = vlog2.pop %v343
          %v346 = vmul.f32 %v345, 0.6931472
          %v347 = vlog2.pop %v344
          %v348 = vmul.f32 %v347, 0.6931472
          %v349 = vadd.f32 %v341, %v346
          %v350 = vadd.f32 %v342, %v348
          %352 = vset.pattern.permute.xlu0 0
          %353 = vperm.xlu0 %352, %v349
          %v354 = vpop.permute.xlu0 %353
          %357 = vset.pattern.permute.xlu0 0
          %358 = vperm.xlu0 %357, %v350
          %v359 = vpop.permute.xlu0 %358
          %v361 = vsub.f32 %v269, %v354
          %v362 = vsub.f32 %v271, %v359
          %vm363 = vcmask 523264
          %364 = vst.msk [vmem:[%s211] sm:$0xff] %vm363, %v361
          %365 = vst.msk [vmem:[%s211 + $0x8] sm:$0xff] %vm363, %v362
        $region44: #{bertlm_forward.19} parent=31 // pred_fallthru
          _
        %s366 = sand.u32 %s126, 1
        %s367 = scalar_lea.sflag [#allocation5], %s366
        %s368 = sand.u32 %s126, 1
        %s369 = smul.addr %s368, 16
        %s370 = scalar_lea.vmem [#allocation4], %s369
        // Predicated region
        $region45: #{bertlm_forward.19} parent=31 // pred_check
          %p371 = pneg %p136
        $region46: #{bertlm_forward.19} parent=31 // pred_check_branch
          %373 = sbr.rel (%p371) target = $region48
        $region47: #{bertlm_forward.19} parent=31 // pred_region
          %s374 = smul.u32 %s24, %s23
          %s375 = smul.u32 2, %s22
          %377 = vsyncadd %s367, 0
          %s378 = sadd.s32 %s374, %s375
          %s379 = smul.addr %s378, 8
          %s380 = scalar_lea.hbm %s3, %s379
          %s381 = sshll.u32 %s370, 4
          %s382 = int_to_ptr.vmem [resolvable:$true] %s381
          %s383 = sshll.u32 %s380, 4
          %s384 = int_to_ptr.hbm [resolvable:$true] %s383
          %389 = dma.vmem_to_hbm [thread:$0]  %s382, 256, %s384, %s367, 128, 128, 8
        $region48: #{bertlm_forward.19} parent=31 // pred_fallthru
          _
      $region32: #{bertlm_forward.19} parent=5 // pred_fallthru
        _
      %p390 = scmp.le.s32.totalorder 2, %s12
      // Predicated region
      $region49: #{bertlm_forward.19} parent=5 // pred_check
        %p391 = pneg %p390
      $region50: #{bertlm_forward.19} parent=5 // pred_check_branch
        %393 = sbr.rel (%p391) target = $region52
      $region51: #{bertlm_forward.19} parent=5 // pred_region
        %s394 = ssub.s32 %s12, 2
        // Predicated region
        $region53: #{bertlm_forward.19} parent=51 // pred_check
          %p395 = pneg %p142
        $region54: #{bertlm_forward.19} parent=51 // pred_check_branch
          %397 = sbr.rel (%p395) target = $region56
        $region55: #{bertlm_forward.19} parent=51 // pred_region
          %s398 = sand.u32 %s127, 1
          %s399 = scalar_lea.sflag [#allocation5], %s398
          %s400 = sand.u32 %s127, 1
          %s401 = smul.addr %s400, 16
          %s402 = scalar_lea.vmem [#allocation4], %s401
          %404 = dma.done %s399, 256
        $region56: #{bertlm_forward.19} parent=51 // pred_fallthru
          _
      $region52: #{bertlm_forward.19} parent=5 // pred_fallthru
        _
    $region6: #{bertlm_forward.19} parent=1 // loop_footer
      %s16 = sadd.s32 1, %s12
    $region7: #{bertlm_forward.19} parent=1 // loop_footer_branch
      %11 = sbr.rel target = $region3
    $region8: #{bertlm_forward.19} parent=1 // loop_exit
      _
    %405 = vsyncpa [#allocation5], 1
    %s406 = scalar_lea.sflag [#allocation5], 1
    %407 = vsyncpa %s406, 1

</llo_original>
